<compile_context>
chip_gen: v7x
topology: tpu7x:2x2x1
jax: 0.10.0
libtpu: 0.0.40
codegen_flags: <defaults>
</compile_context>

<pallas_src>
import math
import functools

import jax
import jax.numpy as jnp
from jax.experimental import pallas as pl
from jax.experimental.pallas import tpu as pltpu


def _attn_kernel(xq_ref, xkv_ref, mask_ref,
                 wq_ref, bq_ref, wkv_ref, bkv_ref,
                 wo_ref, bo_ref, gamma_ref, beta_ref,
                 out_ref,
                 k_scr, v_scr,
                 *, num_heads: int, head_dim: int, eps: float):
    qi = pl.program_id(1)
    D = num_heads * head_dim
    TQ = xq_ref.shape[1]
    S = xkv_ref.shape[1]

    x_q = xq_ref[0]                                        # (TQ, D) f32
    inv_sqrt_hd = 1.0 / math.sqrt(head_dim)

    # ---- fused K|V projection: once per batch element, cached in VMEM ----
    @pl.when(qi == 0)
    def _():
        x_kv = xkv_ref[0].astype(jnp.bfloat16)             # (S, D)
        kv = jnp.dot(x_kv, wkv_ref[...],
                     preferred_element_type=jnp.float32) + bkv_ref[...]   # (S, 2D)
        k = kv[:, :D].reshape(S, num_heads, head_dim)
        v = kv[:, D:].reshape(S, num_heads, head_dim)
        k_scr[...] = jnp.transpose(k, (1, 0, 2)).astype(jnp.bfloat16)     # (H, S, hd)
        v_scr[...] = jnp.transpose(v, (1, 0, 2)).astype(jnp.bfloat16)

    # ---- Q projection for this query tile (scale folded in once) ----
    q = jnp.dot(x_q.astype(jnp.bfloat16), wq_ref[...],
                preferred_element_type=jnp.float32) + bq_ref[...]         # (TQ, D)
    q = q * inv_sqrt_hd
    qh = jnp.transpose(q.reshape(TQ, num_heads, head_dim),
                       (1, 0, 2)).astype(jnp.bfloat16)                    # (H, TQ, hd)

    # ---- batched-head scores + mask + softmax (f32) ----
    scores = jnp.einsum('hqd,hkd->hqk', qh, k_scr[...],
                        preferred_element_type=jnp.float32)               # (H, TQ, S)
    mask_bias = (1.0 - mask_ref[0]) * -10000.0                            # (1, S)
    scores = scores + mask_bias[None, :, :]                               # bcast once

    scores = scores - jnp.max(scores, axis=-1, keepdims=True)
    p = jnp.exp(scores)
    probs = p * pl.reciprocal(jnp.sum(p, axis=-1, keepdims=True), approx=True)

    # ---- context (batched heads) ----
    ctx = jnp.einsum('hqk,hkd->hqd', probs.astype(jnp.bfloat16), v_scr[...],
                     preferred_element_type=jnp.float32)                  # (H, TQ, hd)
    context = jnp.transpose(ctx, (1, 0, 2)).reshape(TQ, D)                # (TQ, D)

    # ---- output dense + residual + LayerNorm (f32, single-pass variance) ----
    proj = jnp.dot(context.astype(jnp.bfloat16), wo_ref[...],
                   preferred_element_type=jnp.float32) + bo_ref[...]
    y = proj + x_q

    mean = jnp.mean(y, axis=-1, keepdims=True)
    meansq = jnp.mean(y * y, axis=-1, keepdims=True)
    var = jnp.maximum(meansq - mean * mean, 0.0)
    normed = (y - mean) * jax.lax.rsqrt(var + eps)
    out_ref[0] = normed * gamma_ref[...] + beta_ref[...]


def attn_forward(hidden_states, attention_mask, params,
                 *, num_heads: int, eps: float = 1e-12):
    """hidden_states: (B, S, D) f32; attention_mask: (B, S) (1 = keep)."""
    B, S, D = hidden_states.shape
    assert D % num_heads == 0
    head_dim = D // num_heads

    # Query tile: multiple of 256 fills the v6e/v7x MXU; fall back to S for
    # small sequences.  TODO(synk): for very long S add a key-tile flash loop.
    TQ = S if S <= 256 else 256
    assert S % TQ == 0
    num_q = S // TQ

    mask3 = attention_mask.reshape(B, 1, S).astype(jnp.float32)

    rep = lambda shape: pl.BlockSpec(shape, lambda b, q: (0, 0))
    kernel = functools.partial(_attn_kernel, num_heads=num_heads,
                               head_dim=head_dim, eps=eps)

    out = pl.pallas_call(
        kernel,
        out_shape=jax.ShapeDtypeStruct((B, S, D), jnp.float32),
        grid_spec=pltpu.PrefetchScalarGridSpec(
            num_scalar_prefetch=0,
            grid=(B, num_q),
            in_specs=[
                pl.BlockSpec((1, TQ, D), lambda b, q: (b, q, 0)),   # x (query tile)
                pl.BlockSpec((1, S, D), lambda b, q: (b, 0, 0)),    # x (full, for K/V)
                pl.BlockSpec((1, 1, S), lambda b, q: (b, 0, 0)),    # attention mask
                rep((D, D)), rep((1, D)),                           # Wq, bq
                rep((D, 2 * D)), rep((1, 2 * D)),                   # W[k|v], b[k|v]
                rep((D, D)), rep((1, D)),                           # Wo, bo
                rep((1, D)), rep((1, D)),                           # gamma, beta
            ],
            out_specs=pl.BlockSpec((1, TQ, D), lambda b, q: (b, q, 0)),
            scratch_shapes=[
                pltpu.VMEM((num_heads, S, head_dim), jnp.bfloat16),  # K cache
                pltpu.VMEM((num_heads, S, head_dim), jnp.bfloat16),  # V cache
            ],
        ),
        compiler_params=pltpu.CompilerParams(
            dimension_semantics=("parallel", "arbitrary")),
    )(hidden_states, hidden_states, mask3,
      params["wq"], params["bq"],
      params["wkv"], params["bkv"],
      params["wo"], params["bo"],
      params["gamma"], params["beta"])
    return out


def make_params(key, attention_dim):
    D = attention_dim
    keys = jax.random.split(key, 8)
    scale = 1.0 / math.sqrt(D)

    def lin(kw, kb):
        w = jax.random.uniform(kw, (D, D), jnp.float32, -scale, scale)  # (in, out)
        b = jax.random.uniform(kb, (1, D), jnp.float32, -scale, scale)
        return w, b

    wq, bq = lin(keys[0], keys[1])
    wk, bk = lin(keys[2], keys[3])
    wv, bv = lin(keys[4], keys[5])
    wo, bo = lin(keys[6], keys[7])
    return dict(
        # matmul weights live in bf16 (halved DMA / VMEM, native MXU dtype)
        wq=wq.astype(jnp.bfloat16),
        wkv=jnp.concatenate([wk, wv], axis=1).astype(jnp.bfloat16),
        wo=wo.astype(jnp.bfloat16),
        # biases / LN params stay f32 (added to f32 accumulators)
        bq=bq, bkv=jnp.concatenate([bk, bv], axis=1), bo=bo,
        gamma=jnp.ones((1, D), jnp.float32),
        beta=jnp.zeros((1, D), jnp.float32),
        # f32 copies for the pure-JAX reference
        _wq=wq, _wk=wk, _wv=wv, _wo=wo, _bk=bk, _bv=bv,
    )


def _reference(x, mask, p, num_heads, eps):
    """Pure-JAX f32 reference of the PyTorch module (eval mode)."""
    B, S, D = x.shape
    hd = D // num_heads
    q = x @ p["_wq"] + p["bq"]
    k = x @ p["_wk"] + p["_bk"]
    v = x @ p["_wv"] + p["_bv"]
    def split(t):
        return jnp.transpose(t.reshape(B, S, num_heads, hd), (0, 2, 1, 3))
    qh, kh, vh = split(q), split(k), split(v)
    scores = jnp.einsum('bhqd,bhkd->bhqk', qh, kh) / math.sqrt(hd)
    bias = (1.0 - mask)[:, None, None, :] * -10000.0
    probs = jax.nn.softmax(scores + bias, axis=-1)
    ctx = jnp.einsum('bhqk,bhkd->bhqd', probs, vh)
    ctx = jnp.transpose(ctx, (0, 2, 1, 3)).reshape(B, S, D)
    y = ctx @ p["_wo"] + p["bo"] + x
    mean = y.mean(-1, keepdims=True)
    var = ((y - mean) ** 2).mean(-1, keepdims=True)
    return (y - mean) / jnp.sqrt(var + eps) * p["gamma"] + p["beta"]


if __name__ == "__main__":
    # config: attention_dim=32, num_attention_heads=4, dropout=0 (eval),
    #         layer_norm_eps=1e-12, output_attentions=False
    B, S, D, H = 2, 8, 32, 4

    key = jax.random.PRNGKey(0)
    k_x, k_p = jax.random.split(key)

    hidden_states = jax.random.normal(k_x, (B, S, D), jnp.float32)
    # 2-D attention mask (1 = attend, 0 = masked); mask out tail of batch 1.
    attention_mask = jnp.ones((B, S), jnp.float32).at[1, S - 2:].set(0.0)

    params = make_params(k_p, D)

    out = attn_forward(hidden_states, attention_mask, params,
                       num_heads=H, eps=1e-12)
    jax.block_until_ready(out)

    assert out.shape == (B, S, D)
    assert jnp.all(jnp.isfinite(out))

    ref = _reference(hidden_states, attention_mask, params, H, 1e-12)
    # bf16 MXU inputs + approx reciprocal => loose tolerance vs f32 reference.
    assert jnp.max(jnp.abs(out - ref)) < 1e-1

    print("KERNEL_OK")
</pallas_src>

<mosaic_0001>
module attributes {stable_mosaic.version = 11 : i64} {
  func.func @_attn_kernel(%arg0: i32, %arg1: i32, %arg2: memref<1x8x32xf32, #tpu.memory_space<vmem>>, %arg3: memref<1x8x32xf32, #tpu.memory_space<vmem>>, %arg4: memref<1x1x8xf32, #tpu.memory_space<vmem>>, %arg5: memref<32x32xbf16, #tpu.memory_space<vmem>>, %arg6: memref<1x32xf32, #tpu.memory_space<vmem>>, %arg7: memref<32x64xbf16, #tpu.memory_space<vmem>>, %arg8: memref<1x64xf32, #tpu.memory_space<vmem>>, %arg9: memref<32x32xbf16, #tpu.memory_space<vmem>>, %arg10: memref<1x32xf32, #tpu.memory_space<vmem>>, %arg11: memref<1x32xf32, #tpu.memory_space<vmem>>, %arg12: memref<1x32xf32, #tpu.memory_space<vmem>>, %arg13: memref<1x8x32xf32, #tpu.memory_space<vmem>>, %arg14: memref<4x8x8xbf16, #tpu.memory_space<vmem>>, %arg15: memref<4x8x8xbf16, #tpu.memory_space<vmem>>) attributes {dimension_semantics = [#tpu.dimension_semantics<parallel>, #tpu.dimension_semantics<arbitrary>], iteration_bounds = array<i64: 2, 1>, scalar_prefetch = 0 : i64, scratch_operands = 2 : i64, tpu.core_type = #tpu.core_type<tc>, window_params = [{transform_indices = @transform_0, window_bounds = array<i64: 1, 8, 32>}, {transform_indices = @transform_1, window_bounds = array<i64: 1, 8, 32>}, {transform_indices = @transform_2, window_bounds = array<i64: 1, 1, 8>}, {pipeline_mode = #tpu.pipeline_mode<synchronous>, transform_indices = @transform_3, window_bounds = array<i64: 32, 32>}, {pipeline_mode = #tpu.pipeline_mode<synchronous>, transform_indices = @transform_4, window_bounds = array<i64: 1, 32>}, {pipeline_mode = #tpu.pipeline_mode<synchronous>, transform_indices = @transform_5, window_bounds = array<i64: 32, 64>}, {pipeline_mode = #tpu.pipeline_mode<synchronous>, transform_indices = @transform_6, window_bounds = array<i64: 1, 64>}, {pipeline_mode = #tpu.pipeline_mode<synchronous>, transform_indices = @transform_7, window_bounds = array<i64: 32, 32>}, {pipeline_mode = #tpu.pipeline_mode<synchronous>, transform_indices = @transform_8, window_bounds = array<i64: 1, 32>}, {pipeline_mode = #tpu.pipeline_mode<synchronous>, transform_indices = @transform_9, window_bounds = array<i64: 1, 32>}, {pipeline_mode = #tpu.pipeline_mode<synchronous>, transform_indices = @transform_10, window_bounds = array<i64: 1, 32>}, {transform_indices = @transform_11, window_bounds = array<i64: 1, 8, 32>}]} {
    %c0 = arith.constant 0 : index
    %c0_0 = arith.constant 0 : index
    %c0_1 = arith.constant 0 : index
    %0 = vector.load %arg2[%c0, %c0_0, %c0_1] : memref<1x8x32xf32, #tpu.memory_space<vmem>>, vector<1x8x32xf32>
    %1 = vector.shape_cast %0 : vector<1x8x32xf32> to vector<8x32xf32>
    %c0_i32 = arith.constant 0 : i32
    %2 = arith.cmpi eq, %arg1, %c0_i32 : i32
    %3 = arith.extui %2 : i1 to i32
    %c0_i32_2 = arith.constant 0 : i32
    %4 = arith.cmpi ne, %3, %c0_i32_2 : i32
    scf.if %4 {
      %c0_41 = arith.constant 0 : index
      %c0_42 = arith.constant 0 : index
      %c0_43 = arith.constant 0 : index
      %78 = vector.load %arg3[%c0_41, %c0_42, %c0_43] : memref<1x8x32xf32, #tpu.memory_space<vmem>>, vector<1x8x32xf32>
      %79 = vector.shape_cast %78 : vector<1x8x32xf32> to vector<8x32xf32>
      %80 = arith.truncf %79 : vector<8x32xf32> to vector<8x32xbf16>
      %c0_44 = arith.constant 0 : index
      %c0_45 = arith.constant 0 : index
      %81 = vector.load %arg7[%c0_44, %c0_45] : memref<32x64xbf16, #tpu.memory_space<vmem>>, vector<32x64xbf16>
      %cst_46 = arith.constant dense<0.000000e+00> : vector<8x64xf32>
      %82 = tpu.matmul %80, %81, %cst_46 {dimension_numbers = #tpu.dot_dimension_numbers<[1], [0], [0], [1], [0, 0, 1, 1], [], []>} : vector<8x32xbf16>, vector<32x64xbf16>, vector<8x64xf32> -> vector<8x64xf32>
      %c0_47 = arith.constant 0 : index
      %c0_48 = arith.constant 0 : index
      %83 = vector.load %arg8[%c0_47, %c0_48] : memref<1x64xf32, #tpu.memory_space<vmem>>, vector<1x64xf32>
      %84 = vector.broadcast %83 : vector<1x64xf32> to vector<8x64xf32>
      %85 = arith.addf %82, %84 : vector<8x64xf32>
      %86 = vector.extract_strided_slice %85 {offsets = [0, 0], sizes = [8, 32], strides = [1, 1]} : vector<8x64xf32> to vector<8x32xf32>
      %87 = vector.shape_cast %86 : vector<8x32xf32> to vector<8x4x8xf32>
      %88 = vector.extract_strided_slice %85 {offsets = [0, 32], sizes = [8, 32], strides = [1, 1]} : vector<8x64xf32> to vector<8x32xf32>
      %89 = vector.shape_cast %88 : vector<8x32xf32> to vector<8x4x8xf32>
      %90 = tpu.transpose %87, [1, 0, 2] : vector<8x4x8xf32> -> vector<4x8x8xf32>
      %91 = arith.truncf %90 : vector<4x8x8xf32> to vector<4x8x8xbf16>
      %c0_49 = arith.constant 0 : index
      %c0_50 = arith.constant 0 : index
      %c0_51 = arith.constant 0 : index
      %92 = vector.load %arg14[%c0_49, %c0_50, %c0_51] : memref<4x8x8xbf16, #tpu.memory_space<vmem>>, vector<4x8x8xbf16>
      tpu.vector_store %arg14[%c0_49, %c0_50, %c0_51], %91 {strides = array<i32>} : memref<4x8x8xbf16, #tpu.memory_space<vmem>>, vector<4x8x8xbf16>,
      %93 = tpu.transpose %89, [1, 0, 2] : vector<8x4x8xf32> -> vector<4x8x8xf32>
      %94 = arith.truncf %93 : vector<4x8x8xf32> to vector<4x8x8xbf16>
      %c0_52 = arith.constant 0 : index
      %c0_53 = arith.constant 0 : index
      %c0_54 = arith.constant 0 : index
      %95 = vector.load %arg15[%c0_52, %c0_53, %c0_54] : memref<4x8x8xbf16, #tpu.memory_space<vmem>>, vector<4x8x8xbf16>
      tpu.vector_store %arg15[%c0_52, %c0_53, %c0_54], %94 {strides = array<i32>} : memref<4x8x8xbf16, #tpu.memory_space<vmem>>, vector<4x8x8xbf16>,
    } else {
    }
    %5 = arith.truncf %1 : vector<8x32xf32> to vector<8x32xbf16>
    %c0_3 = arith.constant 0 : index
    %c0_4 = arith.constant 0 : index
    %6 = vector.load %arg5[%c0_3, %c0_4] : memref<32x32xbf16, #tpu.memory_space<vmem>>, vector<32x32xbf16>
    %cst = arith.constant dense<0.000000e+00> : vector<8x32xf32>
    %7 = tpu.matmul %5, %6, %cst {dimension_numbers = #tpu.dot_dimension_numbers<[1], [0], [0], [1], [0, 0, 1, 1], [], []>} : vector<8x32xbf16>, vector<32x32xbf16>, vector<8x32xf32> -> vector<8x32xf32>
    %c0_5 = arith.constant 0 : index
    %c0_6 = arith.constant 0 : index
    %8 = vector.load %arg6[%c0_5, %c0_6] : memref<1x32xf32, #tpu.memory_space<vmem>>, vector<1x32xf32>
    %9 = vector.broadcast %8 : vector<1x32xf32> to vector<8x32xf32>
    %10 = arith.addf %7, %9 : vector<8x32xf32>
    %cst_7 = arith.constant 0.353553385 : f32
    %11 = vector.broadcast %cst_7 : f32 to vector<8x32xf32>
    %12 = arith.mulf %10, %11 : vector<8x32xf32>
    %13 = vector.shape_cast %12 : vector<8x32xf32> to vector<8x4x8xf32>
    %14 = tpu.transpose %13, [1, 0, 2] : vector<8x4x8xf32> -> vector<4x8x8xf32>
    %15 = arith.truncf %14 : vector<4x8x8xf32> to vector<4x8x8xbf16>
    %c0_8 = arith.constant 0 : index
    %c0_9 = arith.constant 0 : index
    %c0_10 = arith.constant 0 : index
    %16 = vector.load %arg14[%c0_8, %c0_9, %c0_10] : memref<4x8x8xbf16, #tpu.memory_space<vmem>>, vector<4x8x8xbf16>
    "tpu.trace_start"() <{level = 10 : i32, message = "hqd,hkd->hqk"}> : () -> ()
    %cst_11 = arith.constant dense<0.000000e+00> : vector<4x8x8xf32>
    %17 = tpu.matmul %15, %16, %cst_11 {dimension_numbers = #tpu.dot_dimension_numbers<[2], [2], [1], [1], [0, 0, 0, 1, 1, 1], [0], [0]>} : vector<4x8x8xbf16>, vector<4x8x8xbf16>, vector<4x8x8xf32> -> vector<4x8x8xf32>
    "tpu.trace_stop"() : () -> ()
    %c0_12 = arith.constant 0 : index
    %c0_13 = arith.constant 0 : index
    %c0_14 = arith.constant 0 : index
    %18 = vector.load %arg4[%c0_12, %c0_13, %c0_14] : memref<1x1x8xf32, #tpu.memory_space<vmem>>, vector<1x1x8xf32>
    %19 = vector.shape_cast %18 : vector<1x1x8xf32> to vector<1x8xf32>
    %cst_15 = arith.constant 1.000000e+00 : f32
    %20 = vector.broadcast %cst_15 : f32 to vector<1x8xf32>
    %21 = arith.subf %20, %19 : vector<1x8xf32>
    %cst_16 = arith.constant -1.000000e+04 : f32
    %22 = vector.broadcast %cst_16 : f32 to vector<1x8xf32>
    %23 = arith.mulf %21, %22 : vector<1x8xf32>
    %24 = vector.shape_cast %23 : vector<1x8xf32> to vector<1x1x8xf32>
    %25 = vector.broadcast %24 : vector<1x1x8xf32> to vector<4x8x8xf32>
    %26 = arith.addf %17, %25 : vector<4x8x8xf32>
    %cst_17 = arith.constant dense<0xFF800000> : vector<4x8xf32>
    %27 = vector.multi_reduction <maximumf>, %26, %cst_17 [2] : vector<4x8x8xf32> to vector<4x8xf32>
    %28 = vector.shape_cast %27 : vector<4x8xf32> to vector<4x8x1xf32>
    %29 = vector.broadcast %28 : vector<4x8x1xf32> to vector<4x8x8xf32>
    %30 = arith.subf %26, %29 : vector<4x8x8xf32>
    %31 = math.exp %30 : vector<4x8x8xf32>
    %cst_18 = arith.constant dense<0.000000e+00> : vector<4x8xf32>
    %32 = vector.multi_reduction <add>, %31, %cst_18 [2] : vector<4x8x8xf32> to vector<4x8xf32>
    %33 = vector.shape_cast %32 : vector<4x8xf32> to vector<4x8x1xf32>
    %34 = tpu.reciprocal %33 {approx = true} : vector<4x8x1xf32> -> vector<4x8x1xf32>
    %35 = vector.broadcast %34 : vector<4x8x1xf32> to vector<4x8x8xf32>
    %36 = arith.mulf %31, %35 : vector<4x8x8xf32>
    %37 = arith.truncf %36 : vector<4x8x8xf32> to vector<4x8x8xbf16>
    %c0_19 = arith.constant 0 : index
    %c0_20 = arith.constant 0 : index
    %c0_21 = arith.constant 0 : index
    %38 = vector.load %arg15[%c0_19, %c0_20, %c0_21] : memref<4x8x8xbf16, #tpu.memory_space<vmem>>, vector<4x8x8xbf16>
    "tpu.trace_start"() <{level = 10 : i32, message = "hqk,hkd->hqd"}> : () -> ()
    %cst_22 = arith.constant dense<0.000000e+00> : vector<4x8x8xf32>
    %39 = tpu.matmul %37, %38, %cst_22 {dimension_numbers = #tpu.dot_dimension_numbers<[2], [1], [1], [2], [0, 0, 0, 1, 1, 2], [0], [0]>} : vector<4x8x8xbf16>, vector<4x8x8xbf16>, vector<4x8x8xf32> -> vector<4x8x8xf32>
    "tpu.trace_stop"() : () -> ()
    %40 = tpu.transpose %39, [1, 0, 2] : vector<4x8x8xf32> -> vector<8x4x8xf32>
    %41 = vector.shape_cast %40 : vector<8x4x8xf32> to vector<8x32xf32>
    %42 = arith.truncf %41 : vector<8x32xf32> to vector<8x32xbf16>
    %c0_23 = arith.constant 0 : index
    %c0_24 = arith.constant 0 : index
    %43 = vector.load %arg9[%c0_23, %c0_24] : memref<32x32xbf16, #tpu.memory_space<vmem>>, vector<32x32xbf16>
    %cst_25 = arith.constant dense<0.000000e+00> : vector<8x32xf32>
    %44 = tpu.matmul %42, %43, %cst_25 {dimension_numbers = #tpu.dot_dimension_numbers<[1], [0], [0], [1], [0, 0, 1, 1], [], []>} : vector<8x32xbf16>, vector<32x32xbf16>, vector<8x32xf32> -> vector<8x32xf32>
    %c0_26 = arith.constant 0 : index
    %c0_27 = arith.constant 0 : index
    %45 = vector.load %arg10[%c0_26, %c0_27] : memref<1x32xf32, #tpu.memory_space<vmem>>, vector<1x32xf32>
    %46 = vector.broadcast %45 : vector<1x32xf32> to vector<8x32xf32>
    %47 = arith.addf %44, %46 : vector<8x32xf32>
    %48 = arith.addf %47, %1 : vector<8x32xf32>
    %cst_28 = arith.constant dense<0.000000e+00> : vector<8xf32>
    %49 = vector.multi_reduction <add>, %48, %cst_28 [1] : vector<8x32xf32> to vector<8xf32>
    %50 = vector.shape_cast %49 : vector<8xf32> to vector<8x1xf32>
    %cst_29 = arith.constant 3.200000e+01 : f32
    %51 = vector.broadcast %cst_29 : f32 to vector<8x1xf32>
    %52 = arith.divf %50, %51 : vector<8x1xf32>
    %53 = arith.mulf %48, %48 : vector<8x32xf32>
    %cst_30 = arith.constant dense<0.000000e+00> : vector<8xf32>
    %54 = vector.multi_reduction <add>, %53, %cst_30 [1] : vector<8x32xf32> to vector<8xf32>
    %55 = vector.shape_cast %54 : vector<8xf32> to vector<8x1xf32>
    %cst_31 = arith.constant 3.200000e+01 : f32
    %56 = vector.broadcast %cst_31 : f32 to vector<8x1xf32>
    %57 = arith.divf %55, %56 : vector<8x1xf32>
    %58 = arith.mulf %52, %52 : vector<8x1xf32>
    %59 = arith.subf %57, %58 : vector<8x1xf32>
    %cst_32 = arith.constant 0.000000e+00 : f32
    %60 = vector.broadcast %cst_32 : f32 to vector<8x1xf32>
    %61 = arith.maximumf %59, %60 : vector<8x1xf32>
    %62 = vector.broadcast %52 : vector<8x1xf32> to vector<8x32xf32>
    %63 = arith.subf %48, %62 : vector<8x32xf32>
    %cst_33 = arith.constant 9.99999996E-13 : f32
    %64 = vector.broadcast %cst_33 : f32 to vector<8x1xf32>
    %65 = arith.addf %61, %64 : vector<8x1xf32>
    %66 = math.rsqrt %65 : vector<8x1xf32>
    %67 = vector.broadcast %66 : vector<8x1xf32> to vector<8x32xf32>
    %68 = arith.mulf %63, %67 : vector<8x32xf32>
    %c0_34 = arith.constant 0 : index
    %c0_35 = arith.constant 0 : index
    %69 = vector.load %arg11[%c0_34, %c0_35] : memref<1x32xf32, #tpu.memory_space<vmem>>, vector<1x32xf32>
    %70 = vector.broadcast %69 : vector<1x32xf32> to vector<8x32xf32>
    %71 = arith.mulf %68, %70 : vector<8x32xf32>
    %c0_36 = arith.constant 0 : index
    %c0_37 = arith.constant 0 : index
    %72 = vector.load %arg12[%c0_36, %c0_37] : memref<1x32xf32, #tpu.memory_space<vmem>>, vector<1x32xf32>
    %73 = vector.broadcast %72 : vector<1x32xf32> to vector<8x32xf32>
    %74 = arith.addf %71, %73 : vector<8x32xf32>
    %c0_38 = arith.constant 0 : index
    %c0_39 = arith.constant 0 : index
    %c0_40 = arith.constant 0 : index
    %75 = vector.load %arg13[%c0_38, %c0_39, %c0_40] : memref<1x8x32xf32, #tpu.memory_space<vmem>>, vector<1x8x32xf32>
    %76 = vector.shape_cast %75 : vector<1x8x32xf32> to vector<8x32xf32>
    %77 = vector.shape_cast %74 : vector<8x32xf32> to vector<1x8x32xf32>
    tpu.vector_store %arg13[%c0_38, %c0_39, %c0_40], %77 {strides = array<i32>} : memref<1x8x32xf32, #tpu.memory_space<vmem>>, vector<1x8x32xf32>,
    return
  }
  func.func @transform_0(%arg0: i32, %arg1: i32) -> (i32, i32, i32) {
    %c0_i32 = arith.constant 0 : i32
    %c0_i32_0 = arith.constant 0 : i32
    return %arg0, %arg1, %c0_i32 : i32, i32, i32
  }
  func.func @transform_1(%arg0: i32, %arg1: i32) -> (i32, i32, i32) {
    %c0_i32 = arith.constant 0 : i32
    %c0_i32_0 = arith.constant 0 : i32
    %c0_i32_1 = arith.constant 0 : i32
    return %arg0, %c0_i32, %c0_i32_0 : i32, i32, i32
  }
  func.func @transform_2(%arg0: i32, %arg1: i32) -> (i32, i32, i32) {
    %c0_i32 = arith.constant 0 : i32
    %c0_i32_0 = arith.constant 0 : i32
    %c0_i32_1 = arith.constant 0 : i32
    return %arg0, %c0_i32, %c0_i32_0 : i32, i32, i32
  }
  func.func @transform_3(%arg0: i32, %arg1: i32) -> (i32, i32) {
    %c0_i32 = arith.constant 0 : i32
    %c0_i32_0 = arith.constant 0 : i32
    %c0_i32_1 = arith.constant 0 : i32
    return %c0_i32, %c0_i32_0 : i32, i32
  }
  func.func @transform_4(%arg0: i32, %arg1: i32) -> (i32, i32) {
    %c0_i32 = arith.constant 0 : i32
    %c0_i32_0 = arith.constant 0 : i32
    %c0_i32_1 = arith.constant 0 : i32
    return %c0_i32, %c0_i32_0 : i32, i32
  }
  func.func @transform_5(%arg0: i32, %arg1: i32) -> (i32, i32) {
    %c0_i32 = arith.constant 0 : i32
    %c0_i32_0 = arith.constant 0 : i32
    %c0_i32_1 = arith.constant 0 : i32
    return %c0_i32, %c0_i32_0 : i32, i32
  }
  func.func @transform_6(%arg0: i32, %arg1: i32) -> (i32, i32) {
    %c0_i32 = arith.constant 0 : i32
    %c0_i32_0 = arith.constant 0 : i32
    %c0_i32_1 = arith.constant 0 : i32
    return %c0_i32, %c0_i32_0 : i32, i32
  }
  func.func @transform_7(%arg0: i32, %arg1: i32) -> (i32, i32) {
    %c0_i32 = arith.constant 0 : i32
    %c0_i32_0 = arith.constant 0 : i32
    %c0_i32_1 = arith.constant 0 : i32
    return %c0_i32, %c0_i32_0 : i32, i32
  }
  func.func @transform_8(%arg0: i32, %arg1: i32) -> (i32, i32) {
    %c0_i32 = arith.constant 0 : i32
    %c0_i32_0 = arith.constant 0 : i32
    %c0_i32_1 = arith.constant 0 : i32
    return %c0_i32, %c0_i32_0 : i32, i32
  }
  func.func @transform_9(%arg0: i32, %arg1: i32) -> (i32, i32) {
    %c0_i32 = arith.constant 0 : i32
    %c0_i32_0 = arith.constant 0 : i32
    %c0_i32_1 = arith.constant 0 : i32
    return %c0_i32, %c0_i32_0 : i32, i32
  }
  func.func @transform_10(%arg0: i32, %arg1: i32) -> (i32, i32) {
    %c0_i32 = arith.constant 0 : i32
    %c0_i32_0 = arith.constant 0 : i32
    %c0_i32_1 = arith.constant 0 : i32
    return %c0_i32, %c0_i32_0 : i32, i32
  }
  func.func @transform_11(%arg0: i32, %arg1: i32) -> (i32, i32, i32) {
    %c0_i32 = arith.constant 0 : i32
    %c0_i32_0 = arith.constant 0 : i32
    return %arg0, %arg1, %c0_i32 : i32, i32, i32
  }
}

</mosaic_0001>

<llo_original>
// kernel: tpu_custom_call.1
$region0: #{tpu_custom_call.1}
  #allocation0 [shape = 'u32[]', space=smem, size = 0x4, offset = 0x4, fixed_abs, tag = 'smem constant byte address 0x4 - core index']
  #allocation1 [shape = 'u32[144,128]{1,0:T(1,128)}', space=vmem, size = 0x12000, scoped, tag = 'internal scratch']
  #allocation2 [shape = 'bf16[4,8,8]{2,1,0:T(8,128)(2,1)}', space=vmem, size = 0x2000, scoped, tag = 'scratch operand']
  #allocation3 [shape = 'bf16[4,8,8]{2,1,0:T(8,128)(2,1)}', space=vmem, size = 0x2000, scoped, tag = 'scratch operand']
  %s0 = inlined_call_operand.hbm [shape: f32[2,8,32], index: 0, kind: input, shape index: {}]
  %s1 = inlined_call_operand.hbm [shape: f32[2,8,32], index: 1, kind: input, shape index: {}]
  %s2 = inlined_call_operand.vmem [shape: f32[2,1,8], index: 2, kind: input, shape index: {}]
  %s3 = inlined_call_operand.hbm [shape: bf16[32,32], index: 3, kind: input, shape index: {}]
  %s4 = inlined_call_operand.hbm [shape: f32[1,32], index: 4, kind: input, shape index: {}]
  %s5 = inlined_call_operand.vmem [shape: bf16[32,64], index: 5, kind: input, shape index: {}]
  %s6 = inlined_call_operand.vmem [shape: f32[1,64], index: 6, kind: input, shape index: {}]
  %s7 = inlined_call_operand.hbm [shape: bf16[32,32], index: 7, kind: input, shape index: {}]
  %s8 = inlined_call_operand.vmem [shape: f32[1,32], index: 8, kind: input, shape index: {}]
  %s9 = inlined_call_operand.vmem [shape: f32[1,32], index: 9, kind: input, shape index: {}]
  %s10 = inlined_call_operand.vmem [shape: f32[1,32], index: 10, kind: input, shape index: {}]
  %s11 = inlined_call_operand.hbm [shape: f32[2,8,32], index: 11, kind: output, shape index: {}]
  %s12 = sld [smem:[#allocation0]]
  $region101: #{tpu_custom_call.1} parent=0
    _
  %s14 = ssub.s32 1, %s12
  %s15 = scalar_select 0, %s14, %s12
  $region1: #{tpu_custom_call.1} parent=0
    #allocation4 [shape = 'u8[8192]{0}', space=vmem, size = 0x2000, scoped, tag = 'input window, operand 0']
    #allocation5 [shape = 's32[2]{0}', space=sflag, size = 0x8, scoped, tag = 'scoped memory for tpu_custom_call.1']
    #allocation6 [shape = 's32[2]{0}', space=sflag, size = 0x8, scoped, tag = 'scoped memory for tpu_custom_call.1']
    #allocation7 [shape = 'u8[8192]{0}', space=vmem, size = 0x2000, scoped, tag = 'input window, operand 1']
    #allocation8 [shape = 's32[2]{0}', space=sflag, size = 0x8, scoped, tag = 'scoped memory for tpu_custom_call.1']
    #allocation9 [shape = 'u8[8192]{0}', space=vmem, size = 0x2000, scoped, tag = 'input window, operand 3, single buffered']
    #allocation10 [shape = 'u8[512]{0}', space=vmem, size = 0x400, scoped, tag = 'input window, operand 4, single buffered']
    #allocation11 [shape = 's32[1]{0}', space=sflag, size = 0x4, scoped, tag = 'scoped memory for tpu_custom_call.1']
    #allocation12 [shape = 'u8[8192]{0}', space=vmem, size = 0x2000, scoped, tag = 'input window, operand 7, single buffered']
    #allocation13 [shape = 'u8[8192]{0}', space=vmem, size = 0x2000, scoped, tag = 'output window, operand 0']
    %16 = vsyncpa [#allocation5], 0
    %s17 = scalar_lea.sflag [#allocation5], 1
    %18 = vsyncpa %s17, 0
    %19 = vsyncpa [#allocation8], 0
    %s20 = scalar_lea.sflag [#allocation8], 1
    %21 = vsyncpa %s20, 0
    %22 = vsyncpa [#allocation11], 0
    %23 = vsyncpa [#allocation6], 0
    %s24 = scalar_lea.sflag [#allocation6], 1
    %25 = vsyncpa %s24, 0
    loop: start=0, step=1, limit=4
    $region2: #{tpu_custom_call.1} parent=1 // loop_pre_header
      _
    $region3: #{tpu_custom_call.1} parent=1 // loop_header
      %s27 = sphi 0, %s31
      %p28 = scmp.ge.s32.totalorder %s27, 4
      %s34 = sphi 0, %s46
      %s35 = sphi 0, %s42
      %s36 = sphi 0, %s34
      %s37 = sphi 0, %s35
      %s38 = sphi 0, %s36
      %s39 = sphi 0, %s37
      %s51 = sphi 0, %s53
      %s54 = sphi 0, %s51
      %s55 = sphi 0, %s54
      %s71 = sphi 0, %s55
      %s77 = sphi 0, %s79
      %s80 = sphi 0, %s77
      %s81 = sphi 0, %s80
      %s97 = sphi 0, %s81
      %s103 = sphi 0, %s105
      %s106 = sphi 0, %s103
      %s107 = sphi 0, %s106
      %s123 = sphi 0, %s107
      %s127 = sphi 0, %s127
      %s129 = sphi 0, %s127
      %s130 = sphi 0, %s129
      %s144 = sphi 0, %s130
      %s148 = sphi 0, %s148
      %s150 = sphi 0, %s148
      %s151 = sphi 0, %s150
      %s165 = sphi 0, %s151
      %s169 = sphi 0, %s169
      %s171 = sphi 0, %s169
      %s172 = sphi 0, %s171
      %s186 = sphi 0, %s172
      %s190 = sphi 0, %s190
      %s192 = sphi 0, %s190
      %s193 = sphi 0, %s192
      %s207 = sphi 0, %s193
      %s211 = sphi 0, %s211
      %s213 = sphi 0, %s211
      %s214 = sphi 0, %s213
      %s228 = sphi 0, %s214
      %s232 = sphi 0, %s232
      %s234 = sphi 0, %s232
      %s235 = sphi 0, %s234
      %s249 = sphi 0, %s235
      %s253 = sphi 0, %s253
      %s255 = sphi 0, %s253
      %s256 = sphi 0, %s255
      %s270 = sphi 0, %s256
      %s274 = sphi 0, %s274
      %s276 = sphi 0, %s274
      %s277 = sphi 0, %s276
      %s291 = sphi 0, %s277
      %s299 = sphi 0, %s301
      %s302 = sphi 0, %s299
      %s303 = sphi 0, %s302
      %s319 = sphi 0, %s303
    $region4: #{tpu_custom_call.1} parent=1 // loop_header_branch
      %30 = sbr.rel (%p28) target = $region8
    $region5: #{tpu_custom_call.1} parent=1 // loop_body
      %s32 = ssub.s32 %s27, 1
      %s33 = ssub.s32 %s27, 2
      %s40 = sadd.s32 1, %s35
      %p41 = scmp.ge.s32.totalorder %s40, 1
      %s42 = scalar_select %p41, 0, %s40
      %s43 = sadd.s32 1, %s34
      %s44 = scalar_select %p41, %s43, %s34
      %p45 = scmp.ge.s32.totalorder %s44, 2
      %s46 = scalar_select %p45, 0, %s44
      %s47 = ssub.s32 %s34, %s46
      %s48 = ssub.s32 %s35, %s42
      %s49 = sor.u32 %s47, %s48
      %p50 = scmp.eq.s32.totalorder %s49, 0
      %s52 = sadd.s32 %s51, 1
      %s53 = scalar_select %p50, %s51, %s52
      %p56 = pneg %p50
      %p57 = scmp.eq.s32.totalorder %s27, 1
      %p58 = por %p56, %p57
      %p59 = scmp.ne.s32.totalorder %s51, %s54
      %p60 = scmp.eq.s32.totalorder %s27, 0
      %p61 = por %p59, %p60
      %p62 = scmp.ne.s32.totalorder %s51, %s54
      %p63 = scmp.eq.s32.totalorder %s32, 1
      %p64 = por %p62, %p63
      %p65 = scmp.ne.s32.totalorder %s54, %s55
      %p66 = scmp.eq.s32.totalorder %s32, 0
      %p67 = por %p65, %p66
      %p68 = scmp.ne.s32.totalorder %s54, %s55
      %p69 = scmp.eq.s32.totalorder %s33, 1
      %p70 = por %p68, %p69
      %p72 = scmp.ne.s32.totalorder %s55, %s71
      %p73 = scmp.eq.s32.totalorder %s33, 0
      %p74 = por %p72, %p73
      %s75 = ssub.s32 %s34, %s46
      %p76 = scmp.eq.s32.totalorder %s75, 0
      %s78 = sadd.s32 %s77, 1
      %s79 = scalar_select %p76, %s77, %s78
      %p82 = pneg %p76
      %p83 = scmp.eq.s32.totalorder %s27, 1
      %p84 = por %p82, %p83
      %p85 = scmp.ne.s32.totalorder %s77, %s80
      %p86 = scmp.eq.s32.totalorder %s27, 0
      %p87 = por %p85, %p86
      %p88 = scmp.ne.s32.totalorder %s77, %s80
      %p89 = scmp.eq.s32.totalorder %s32, 1
      %p90 = por %p88, %p89
      %p91 = scmp.ne.s32.totalorder %s80, %s81
      %p92 = scmp.eq.s32.totalorder %s32, 0
      %p93 = por %p91, %p92
      %p94 = scmp.ne.s32.totalorder %s80, %s81
      %p95 = scmp.eq.s32.totalorder %s33, 1
      %p96 = por %p94, %p95
      %p98 = scmp.ne.s32.totalorder %s81, %s97
      %p99 = scmp.eq.s32.totalorder %s33, 0
      %p100 = por %p98, %p99
      %s101 = ssub.s32 %s34, %s46
      %p102 = scmp.eq.s32.totalorder %s101, 0
      %s104 = sadd.s32 %s103, 1
      %s105 = scalar_select %p102, %s103, %s104
      %p108 = pneg %p102
      %p109 = scmp.eq.s32.totalorder %s27, 1
      %p110 = por %p108, %p109
      %p111 = scmp.ne.s32.totalorder %s103, %s106
      %p112 = scmp.eq.s32.totalorder %s27, 0
      %p113 = por %p111, %p112
      %p114 = scmp.ne.s32.totalorder %s103, %s106
      %p115 = scmp.eq.s32.totalorder %s32, 1
      %p116 = por %p114, %p115
      %p117 = scmp.ne.s32.totalorder %s106, %s107
      %p118 = scmp.eq.s32.totalorder %s32, 0
      %p119 = por %p117, %p118
      %p120 = scmp.ne.s32.totalorder %s106, %s107
      %p121 = scmp.eq.s32.totalorder %s33, 1
      %p122 = por %p120, %p121
      %p124 = scmp.ne.s32.totalorder %s107, %s123
      %p125 = scmp.eq.s32.totalorder %s33, 0
      %p126 = por %p124, %p125
      %s128 = sadd.s32 %s127, 1
      %p131 = scmp.eq.s32.totalorder %s27, 1
      %p132 = scmp.ne.s32.totalorder %s127, %s129
      %p133 = scmp.eq.s32.totalorder %s27, 0
      %p134 = por %p132, %p133
      %p135 = scmp.ne.s32.totalorder %s127, %s129
      %p136 = scmp.eq.s32.totalorder %s32, 1
      %p137 = por %p135, %p136
      %p138 = scmp.ne.s32.totalorder %s129, %s130
      %p139 = scmp.eq.s32.totalorder %s32, 0
      %p140 = por %p138, %p139
      %p141 = scmp.ne.s32.totalorder %s129, %s130
      %p142 = scmp.eq.s32.totalorder %s33, 1
      %p143 = por %p141, %p142
      %p145 = scmp.ne.s32.totalorder %s130, %s144
      %p146 = scmp.eq.s32.totalorder %s33, 0
      %p147 = por %p145, %p146
      %s149 = sadd.s32 %s148, 1
      %p152 = scmp.eq.s32.totalorder %s27, 1
      %p153 = scmp.ne.s32.totalorder %s148, %s150
      %p154 = scmp.eq.s32.totalorder %s27, 0
      %p155 = por %p153, %p154
      %p156 = scmp.ne.s32.totalorder %s148, %s150
      %p157 = scmp.eq.s32.totalorder %s32, 1
      %p158 = por %p156, %p157
      %p159 = scmp.ne.s32.totalorder %s150, %s151
      %p160 = scmp.eq.s32.totalorder %s32, 0
      %p161 = por %p159, %p160
      %p162 = scmp.ne.s32.totalorder %s150, %s151
      %p163 = scmp.eq.s32.totalorder %s33, 1
      %p164 = por %p162, %p163
      %p166 = scmp.ne.s32.totalorder %s151, %s165
      %p167 = scmp.eq.s32.totalorder %s33, 0
      %p168 = por %p166, %p167
      %s170 = sadd.s32 %s169, 1
      %p173 = scmp.eq.s32.totalorder %s27, 1
      %p174 = scmp.ne.s32.totalorder %s169, %s171
      %p175 = scmp.eq.s32.totalorder %s27, 0
      %p176 = por %p174, %p175
      %p177 = scmp.ne.s32.totalorder %s169, %s171
      %p178 = scmp.eq.s32.totalorder %s32, 1
      %p179 = por %p177, %p178
      %p180 = scmp.ne.s32.totalorder %s171, %s172
      %p181 = scmp.eq.s32.totalorder %s32, 0
      %p182 = por %p180, %p181
      %p183 = scmp.ne.s32.totalorder %s171, %s172
      %p184 = scmp.eq.s32.totalorder %s33, 1
      %p185 = por %p183, %p184
      %p187 = scmp.ne.s32.totalorder %s172, %s186
      %p188 = scmp.eq.s32.totalorder %s33, 0
      %p189 = por %p187, %p188
      %s191 = sadd.s32 %s190, 1
      %p194 = scmp.eq.s32.totalorder %s27, 1
      %p195 = scmp.ne.s32.totalorder %s190, %s192
      %p196 = scmp.eq.s32.totalorder %s27, 0
      %p197 = por %p195, %p196
      %p198 = scmp.ne.s32.totalorder %s190, %s192
      %p199 = scmp.eq.s32.totalorder %s32, 1
      %p200 = por %p198, %p199
      %p201 = scmp.ne.s32.totalorder %s192, %s193
      %p202 = scmp.eq.s32.totalorder %s32, 0
      %p203 = por %p201, %p202
      %p204 = scmp.ne.s32.totalorder %s192, %s193
      %p205 = scmp.eq.s32.totalorder %s33, 1
      %p206 = por %p204, %p205
      %p208 = scmp.ne.s32.totalorder %s193, %s207
      %p209 = scmp.eq.s32.totalorder %s33, 0
      %p210 = por %p208, %p209
      %s212 = sadd.s32 %s211, 1
      %p215 = scmp.eq.s32.totalorder %s27, 1
      %p216 = scmp.ne.s32.totalorder %s211, %s213
      %p217 = scmp.eq.s32.totalorder %s27, 0
      %p218 = por %p216, %p217
      %p219 = scmp.ne.s32.totalorder %s211, %s213
      %p220 = scmp.eq.s32.totalorder %s32, 1
      %p221 = por %p219, %p220
      %p222 = scmp.ne.s32.totalorder %s213, %s214
      %p223 = scmp.eq.s32.totalorder %s32, 0
      %p224 = por %p222, %p223
      %p225 = scmp.ne.s32.totalorder %s213, %s214
      %p226 = scmp.eq.s32.totalorder %s33, 1
      %p227 = por %p225, %p226
      %p229 = scmp.ne.s32.totalorder %s214, %s228
      %p230 = scmp.eq.s32.totalorder %s33, 0
      %p231 = por %p229, %p230
      %s233 = sadd.s32 %s232, 1
      %p236 = scmp.eq.s32.totalorder %s27, 1
      %p237 = scmp.ne.s32.totalorder %s232, %s234
      %p238 = scmp.eq.s32.totalorder %s27, 0
      %p239 = por %p237, %p238
      %p240 = scmp.ne.s32.totalorder %s232, %s234
      %p241 = scmp.eq.s32.totalorder %s32, 1
      %p242 = por %p240, %p241
      %p243 = scmp.ne.s32.totalorder %s234, %s235
      %p244 = scmp.eq.s32.totalorder %s32, 0
      %p245 = por %p243, %p244
      %p246 = scmp.ne.s32.totalorder %s234, %s235
      %p247 = scmp.eq.s32.totalorder %s33, 1
      %p248 = por %p246, %p247
      %p250 = scmp.ne.s32.totalorder %s235, %s249
      %p251 = scmp.eq.s32.totalorder %s33, 0
      %p252 = por %p250, %p251
      %s254 = sadd.s32 %s253, 1
      %p257 = scmp.eq.s32.totalorder %s27, 1
      %p258 = scmp.ne.s32.totalorder %s253, %s255
      %p259 = scmp.eq.s32.totalorder %s27, 0
      %p260 = por %p258, %p259
      %p261 = scmp.ne.s32.totalorder %s253, %s255
      %p262 = scmp.eq.s32.totalorder %s32, 1
      %p263 = por %p261, %p262
      %p264 = scmp.ne.s32.totalorder %s255, %s256
      %p265 = scmp.eq.s32.totalorder %s32, 0
      %p266 = por %p264, %p265
      %p267 = scmp.ne.s32.totalorder %s255, %s256
      %p268 = scmp.eq.s32.totalorder %s33, 1
      %p269 = por %p267, %p268
      %p271 = scmp.ne.s32.totalorder %s256, %s270
      %p272 = scmp.eq.s32.totalorder %s33, 0
      %p273 = por %p271, %p272
      %s275 = sadd.s32 %s274, 1
      %p278 = scmp.eq.s32.totalorder %s27, 1
      %p279 = scmp.ne.s32.totalorder %s274, %s276
      %p280 = scmp.eq.s32.totalorder %s27, 0
      %p281 = por %p279, %p280
      %p282 = scmp.ne.s32.totalorder %s274, %s276
      %p283 = scmp.eq.s32.totalorder %s32, 1
      %p284 = por %p282, %p283
      %p285 = scmp.ne.s32.totalorder %s276, %s277
      %p286 = scmp.eq.s32.totalorder %s32, 0
      %p287 = por %p285, %p286
      %p288 = scmp.ne.s32.totalorder %s276, %s277
      %p289 = scmp.eq.s32.totalorder %s33, 1
      %p290 = por %p288, %p289
      %p292 = scmp.ne.s32.totalorder %s277, %s291
      %p293 = scmp.eq.s32.totalorder %s33, 0
      %p294 = por %p292, %p293
      %s295 = ssub.s32 %s34, %s46
      %s296 = ssub.s32 %s35, %s42
      %s297 = sor.u32 %s295, %s296
      %p298 = scmp.eq.s32.totalorder %s297, 0
      %s300 = sadd.s32 %s299, 1
      %s301 = scalar_select %p298, %s299, %s300
      %p304 = pneg %p298
      %p305 = scmp.eq.s32.totalorder %s27, 1
      %p306 = por %p304, %p305
      %p307 = scmp.ne.s32.totalorder %s299, %s302
      %p308 = scmp.eq.s32.totalorder %s27, 0
      %p309 = por %p307, %p308
      %p310 = scmp.ne.s32.totalorder %s299, %s302
      %p311 = scmp.eq.s32.totalorder %s32, 1
      %p312 = por %p310, %p311
      %p313 = scmp.ne.s32.totalorder %s302, %s303
      %p314 = scmp.eq.s32.totalorder %s32, 0
      %p315 = por %p313, %p314
      %p316 = scmp.ne.s32.totalorder %s302, %s303
      %p317 = scmp.eq.s32.totalorder %s33, 1
      %p318 = por %p316, %p317
      %p320 = scmp.ne.s32.totalorder %s303, %s319
      %p321 = scmp.eq.s32.totalorder %s33, 0
      %p322 = por %p320, %p321
      %p323 = scmp.le.s32.totalorder 1, %s27
      %p324 = scmp.lt.s32.totalorder %s27, 3
      %p325 = pnand %p323, %p324
      %p326 = pneg %p325
      // Predicated region
      $region9: #{tpu_custom_call.1} parent=5 // pred_check
        _
      $region10: #{tpu_custom_call.1} parent=5 // pred_check_branch
        %328 = sbr.rel (%p325) target = $region12
      $region11: #{tpu_custom_call.1} parent=5 // pred_region
        %s329 = ssub.s32 %s27, 1
        // Predicated region
        $region13: #{tpu_custom_call.1} parent=11 // pred_check
          %p330 = pneg %p140
        $region14: #{tpu_custom_call.1} parent=11 // pred_check_branch
          %332 = sbr.rel (%p330) target = $region16
        $region15: #{tpu_custom_call.1} parent=11 // pred_region
          %s334 = ssub.s32 256, 256
          %335 = vsyncadd [#allocation8], %s334
          %s336 = sshll.u32 [#allocation9], 4
          %s337 = int_to_ptr.vmem [resolvable:$true] %s336
          %342 = dma.hbm_to_vmem [thread:$0]  %s3, 256, %s337, [#allocation8], 64, 64, 4
        $region16: #{tpu_custom_call.1} parent=11 // pred_fallthru
          _
        // Predicated region
        $region17: #{tpu_custom_call.1} parent=11 // pred_check
          %p343 = pneg %p161
        $region18: #{tpu_custom_call.1} parent=11 // pred_check_branch
          %345 = sbr.rel (%p343) target = $region20
        $region19: #{tpu_custom_call.1} parent=11 // pred_region
          %s347 = ssub.s32 16, 16
          %348 = vsyncadd [#allocation11], %s347
          %s350 = sshll.u32 [#allocation10], 4
          %s351 = int_to_ptr.vmem [resolvable:$true] %s350
          %353 = dma.hbm_to_vmem [thread:$0]  %s4, 16, %s351, [#allocation11]
        $region20: #{tpu_custom_call.1} parent=11 // pred_fallthru
          _
        // Predicated region
        $region21: #{tpu_custom_call.1} parent=11 // pred_check
          %p354 = pneg %p182
        $region22: #{tpu_custom_call.1} parent=11 // pred_check_branch
          %356 = sbr.rel (%p354) target = $region24
        $region23: #{tpu_custom_call.1} parent=11 // pred_region
          _
        $region24: #{tpu_custom_call.1} parent=11 // pred_fallthru
          _
        // Predicated region
        $region25: #{tpu_custom_call.1} parent=11 // pred_check
          %p357 = pneg %p203
        $region26: #{tpu_custom_call.1} parent=11 // pred_check_branch
          %359 = sbr.rel (%p357) target = $region28
        $region27: #{tpu_custom_call.1} parent=11 // pred_region
          _
        $region28: #{tpu_custom_call.1} parent=11 // pred_fallthru
          _
        // Predicated region
        $region29: #{tpu_custom_call.1} parent=11 // pred_check
          %p360 = pneg %p224
        $region30: #{tpu_custom_call.1} parent=11 // pred_check_branch
          %362 = sbr.rel (%p360) target = $region32
        $region31: #{tpu_custom_call.1} parent=11 // pred_region
          %s364 = ssub.s32 256, 256
          %365 = vsyncadd [#allocation11], %s364
          %s366 = sshll.u32 [#allocation12], 4
          %s367 = int_to_ptr.vmem [resolvable:$true] %s366
          %372 = dma.hbm_to_vmem [thread:$0]  %s7, 256, %s367, [#allocation11], 64, 64, 4
        $region32: #{tpu_custom_call.1} parent=11 // pred_fallthru
          _
        // Predicated region
        $region33: #{tpu_custom_call.1} parent=11 // pred_check
          %p373 = pneg %p245
        $region34: #{tpu_custom_call.1} parent=11 // pred_check_branch
          %375 = sbr.rel (%p373) target = $region36
        $region35: #{tpu_custom_call.1} parent=11 // pred_region
          _
        $region36: #{tpu_custom_call.1} parent=11 // pred_fallthru
          _
        // Predicated region
        $region37: #{tpu_custom_call.1} parent=11 // pred_check
          %p376 = pneg %p266
        $region38: #{tpu_custom_call.1} parent=11 // pred_check_branch
          %378 = sbr.rel (%p376) target = $region40
        $region39: #{tpu_custom_call.1} parent=11 // pred_region
          _
        $region40: #{tpu_custom_call.1} parent=11 // pred_fallthru
          _
        // Predicated region
        $region41: #{tpu_custom_call.1} parent=11 // pred_check
          %p379 = pneg %p287
        $region42: #{tpu_custom_call.1} parent=11 // pred_check_branch
          %381 = sbr.rel (%p379) target = $region44
        $region43: #{tpu_custom_call.1} parent=11 // pred_region
          _
        $region44: #{tpu_custom_call.1} parent=11 // pred_fallthru
          _
      $region12: #{tpu_custom_call.1} parent=5 // pred_fallthru
        _
      %p382 = scmp.lt.s32.totalorder %s27, 2
      // Predicated region
      $region45: #{tpu_custom_call.1} parent=5 // pred_check
        %p383 = pneg %p382
      $region46: #{tpu_custom_call.1} parent=5 // pred_check_branch
        %385 = sbr.rel (%p383) target = $region48
      $region47: #{tpu_custom_call.1} parent=5 // pred_region
        // Predicated region
        $region49: #{tpu_custom_call.1} parent=47 // pred_check
          %p386 = pneg %p61
        $region50: #{tpu_custom_call.1} parent=47 // pred_check_branch
          %388 = sbr.rel (%p386) target = $region52
        $region51: #{tpu_custom_call.1} parent=47 // pred_region
          %s389 = sand.u32 %s51, 1
          %s390 = scalar_lea.sflag [#allocation5], %s389
          %s391 = sand.u32 %s51, 1
          %s392 = smul.addr %s391, 8
          %s393 = scalar_lea.vmem [#allocation4], %s392
          %s395 = ssub.s32 128, 128
          %396 = vsyncadd %s390, %s395
          %s397 = sadd.s32 %s35, %s34
          %s398 = smul.addr %s397, 128
          %s399 = scalar_lea.hbm %s0, %s398
          %s401 = sshll.u32 %s393, 4
          %s402 = int_to_ptr.vmem [resolvable:$true] %s401
          %404 = dma.hbm_to_vmem [thread:$0]  %s399, 128, %s402, %s390
        $region52: #{tpu_custom_call.1} parent=47 // pred_fallthru
          _
        // Predicated region
        $region53: #{tpu_custom_call.1} parent=47 // pred_check
          %p405 = pneg %p87
        $region54: #{tpu_custom_call.1} parent=47 // pred_check_branch
          %407 = sbr.rel (%p405) target = $region56
        $region55: #{tpu_custom_call.1} parent=47 // pred_region
          %s408 = sand.u32 %s27, 1
          %s409 = scalar_lea.sflag [#allocation8], %s408
          %s410 = sand.u32 %s77, 1
          %s411 = smul.addr %s410, 8
          %s412 = scalar_lea.vmem [#allocation7], %s411
          %s414 = ssub.s32 128, 128
          %415 = vsyncadd %s409, %s414
          %s416 = smul.addr %s34, 128
          %s417 = scalar_lea.hbm %s1, %s416
          %s419 = sshll.u32 %s412, 4
          %s420 = int_to_ptr.vmem [resolvable:$true] %s419
          %422 = dma.hbm_to_vmem [thread:$0]  %s417, 128, %s420, %s409
        $region56: #{tpu_custom_call.1} parent=47 // pred_fallthru
          _
        // Predicated region
        $region57: #{tpu_custom_call.1} parent=47 // pred_check
          %p423 = pneg %p113
        $region58: #{tpu_custom_call.1} parent=47 // pred_check_branch
          %425 = sbr.rel (%p423) target = $region60
        $region59: #{tpu_custom_call.1} parent=47 // pred_region
          %p426 = scmp.lt.s32.totalorder %s34, 1
          %s427 = scalar_select %p426, %s34, 1
          %s428 = scalar_lea.vmem %s2, %s427
        $region60: #{tpu_custom_call.1} parent=47 // pred_fallthru
          _
      $region48: #{tpu_custom_call.1} parent=5 // pred_fallthru
        _
      %p429 = scmp.le.s32.totalorder 1, %s27
      %p430 = scmp.lt.s32.totalorder %s27, 3
      %p431 = pnand %p429, %p430
      %p432 = pneg %p431
      // Predicated region
      $region61: #{tpu_custom_call.1} parent=5 // pred_check
        _
      $region62: #{tpu_custom_call.1} parent=5 // pred_check_branch
        %434 = sbr.rel (%p431) target = $region64
      $region63: #{tpu_custom_call.1} parent=5 // pred_region
        %s435 = ssub.s32 %s27, 1
        %s436 = sand.u32 %s54, 1
        %s437 = scalar_lea.sflag [#allocation5], %s436
        %s438 = sand.u32 %s54, 1
        %s439 = smul.addr %s438, 8
        %s440 = scalar_lea.vmem [#allocation4], %s439
        // Predicated region
        $region65: #{tpu_custom_call.1} parent=63 // pred_check
          %p441 = pneg %p67
        $region66: #{tpu_custom_call.1} parent=63 // pred_check_branch
          %443 = sbr.rel (%p441) target = $region68
        $region67: #{tpu_custom_call.1} parent=63 // pred_region
          %444 = dma.done %s437, 128
        $region68: #{tpu_custom_call.1} parent=63 // pred_fallthru
          _
        %s445 = sand.u32 %s32, 1
        %s446 = scalar_lea.sflag [#allocation8], %s445
        %s447 = sand.u32 %s80, 1
        %s448 = smul.addr %s447, 8
        %s449 = scalar_lea.vmem [#allocation7], %s448
        // Predicated region
        $region69: #{tpu_custom_call.1} parent=63 // pred_check
          %p450 = pneg %p93
        $region70: #{tpu_custom_call.1} parent=63 // pred_check_branch
          %452 = sbr.rel (%p450) target = $region72
        $region71: #{tpu_custom_call.1} parent=63 // pred_region
          %453 = dma.done %s446, 128
        $region72: #{tpu_custom_call.1} parent=63 // pred_fallthru
          _
        // Predicated region
        $region73: #{tpu_custom_call.1} parent=63 // pred_check
          %p454 = pneg %p140
        $region74: #{tpu_custom_call.1} parent=63 // pred_check_branch
          %456 = sbr.rel (%p454) target = $region76
        $region75: #{tpu_custom_call.1} parent=63 // pred_region
          %457 = dma.done [#allocation8], 256
        $region76: #{tpu_custom_call.1} parent=63 // pred_fallthru
          _
        // Predicated region
        $region77: #{tpu_custom_call.1} parent=63 // pred_check
          %p458 = pneg %p161
        $region78: #{tpu_custom_call.1} parent=63 // pred_check_branch
          %460 = sbr.rel (%p458) target = $region80
        $region79: #{tpu_custom_call.1} parent=63 // pred_region
          %461 = dma.done [#allocation11], 16
        $region80: #{tpu_custom_call.1} parent=63 // pred_fallthru
          _
        // Predicated region
        $region81: #{tpu_custom_call.1} parent=63 // pred_check
          %p462 = pneg %p224
        $region82: #{tpu_custom_call.1} parent=63 // pred_check_branch
          %464 = sbr.rel (%p462) target = $region84
        $region83: #{tpu_custom_call.1} parent=63 // pred_region
          %465 = dma.done [#allocation11], 256
        $region84: #{tpu_custom_call.1} parent=63 // pred_fallthru
          _
        %s466 = sand.u32 %s54, 1
        %s467 = scalar_lea.sflag [#allocation5], %s466
        %s468 = sand.u32 %s54, 1
        %s469 = smul.addr %s468, 8
        %s470 = scalar_lea.vmem [#allocation4], %s469
        %p471 = pneg %p67
        %p472 = pneg %p64
        %s473 = sand.u32 %s32, 1
        %s474 = scalar_lea.sflag [#allocation8], %s473
        %s475 = sand.u32 %s80, 1
        %s476 = smul.addr %s475, 8
        %s477 = scalar_lea.vmem [#allocation7], %s476
        %p478 = pneg %p93
        %p479 = pneg %p90
        %p480 = scmp.lt.s32.totalorder %s36, 1
        %s481 = scalar_select %p480, %s36, 1
        %s482 = scalar_lea.vmem %s2, %s481
        %p483 = pneg %p119
        %p484 = pneg %p116
        %p485 = pneg %p140
        %p486 = pneg %p137
        %p487 = pneg %p161
        %p488 = pneg %p158
        %p489 = pneg %p182
        %p490 = pneg %p179
        %p491 = pneg %p203
        %p492 = pneg %p200
        %p493 = pneg %p224
        %p494 = pneg %p221
        %p495 = pneg %p245
        %p496 = pneg %p242
        %p497 = pneg %p266
        %p498 = pneg %p263
        %p499 = pneg %p287
        %p500 = pneg %p284
        %p501 = pneg %p315
        %p502 = pneg %p312
        %s503 = sand.u32 %s302, 1
        %s504 = scalar_lea.sflag [#allocation6], %s503
        %s505 = sand.u32 %s302, 1
        %s506 = smul.addr %s505, 8
        %s507 = scalar_lea.vmem [#allocation13], %s506
        %p508 = scmp.lt.s32.totalorder %s36, 1
        %s509 = scalar_select %p508, %s36, 1
        %s510 = scalar_lea.vmem %s2, %s509
        %v512 = vld [vmem:[%s440] sm:$0xff]
        %p513 = scmp.eq.s32.totalorder %s37, 0
        // Predicated region
        $region85: #{tpu_custom_call.1} parent=63 // pred_check
          %p514 = pneg %p513
        $region86: #{tpu_custom_call.1} parent=63 // pred_check_branch
          %516 = sbr.rel (%p514) target = $region88
        $region87: #{tpu_custom_call.1} parent=63 // pred_region
          %v517 = vld [vmem:[%s449] sm:$0xff]
          %v518 = vpack.c.bf16 %v517, %v517
          %v519 = vld [vmem:[%s5] sm:$0xf]
          %v520 = vld [vmem:[%s5 + $0x4] sm:$0xf]
          %v521 = vld [vmem:[%s5 + $0x8] sm:$0xf]
          %v522 = vld [vmem:[%s5 + $0xc] sm:$0xf]
          %v523 = vld [vmem:[%s6] sm:$0x1]
          %v525 = vlaneseq
          %v526 = vshrl.u32 %v525, 7
          %v527 = vsub.s32 0, %v526
          %v528 = vrot.slane %v523, %v527
          %v534 = vunpack.c.l.b16 %v519
          %v535 = vunpack.c.l.b16 %v520
          %v536 = vunpack.c.l.b16 %v521
          %v537 = vunpack.c.l.b16 %v522
          %v538 = vpack.c.b16 %v535, %v534
          %v539 = vpack.c.b16 %v537, %v536
          %vm542 = vcmask 261120
          %v544 = vsel %vm542, %v518, 0
          %546 = vmatprep.subr.bf16.mxu0 0
          %547 = vmatpush1.bf16.msra.mxu0 %v538
          %548 = vmatprep.subr.bf16.mxu0 0
          %549 = vmatpush1.bf16.msra.mxu0 %v539
          %550 = vmatprep.subr.bf16.mxu0 0
          %551 = vmatpush1.bf16.msra.mxu0 0
          %552 = vmatprep.subr.bf16.mxu0 0
          %553 = vmatpush1.bf16.msra.mxu0 0
          %554 = vmatprep.subr.bf16.mxu0 0
          %555 = vmatpush1.bf16.msra.mxu0 0
          %556 = vmatprep.subr.bf16.mxu0 0
          %557 = vmatpush1.bf16.msra.mxu0 0
          %558 = vmatprep.subr.bf16.mxu0 0
          %559 = vmatpush1.bf16.msra.mxu0 0
          %560 = vmatprep.subr.bf16.mxu0 0
          %561 = vmatpush1.bf16.msra.mxu0 0
          %562 = vmatprep.subr.bf16.mxu0 0
          %563 = vmatpush1.bf16.msra.mxu0 0
          %564 = vmatprep.subr.bf16.mxu0 0
          %565 = vmatpush1.bf16.msra.mxu0 0
          %566 = vmatprep.subr.bf16.mxu0 0
          %567 = vmatpush1.bf16.msra.mxu0 0
          %568 = vmatprep.subr.bf16.mxu0 0
          %569 = vmatpush1.bf16.msra.mxu0 0
          %570 = vmatprep.subr.bf16.mxu0 0
          %571 = vmatpush1.bf16.msra.mxu0 0
          %572 = vmatprep.subr.bf16.mxu0 0
          %573 = vmatpush1.bf16.msra.mxu0 0
          %574 = vmatprep.subr.bf16.mxu0 0
          %575 = vmatpush1.bf16.msra.mxu0 0
          %576 = vmatprep.subr.bf16.mxu0 0
          %577 = vmatpush1.bf16.msra.mxu0 0
          %578 = vmatprep.mubr.bf16.mxu0 0
          %579 = vmatmul.mubr.bf16.gmra.mrb[0].mxu0 %v544
          %v580 = vpop.f32.mrb[0].mxu0
          %v581 = vadd.f32 %v528, %v580
          %v582 = vpop.f32.mrb[0].mxu0
          %v583 = vpop.f32.mrb[0].mxu0
          %v584 = vpop.f32.mrb[0].mxu0
          %585 = vdwg.mxu0
          %587 = vrot.lane.b32.xlu0 %v581, 120
          %v588 = vpop.permute.xlu0 %587
          %590 = vrot.lane.b32.xlu0 %v581, 112
          %v591 = vpop.permute.xlu0 %590
          %593 = vrot.lane.b32.xlu0 %v581, 104
          %v594 = vpop.permute.xlu0 %593
          %v596 = vcombine.low %v581, %v591
          %v597 = vcombine.high %v581, %v591
          %v599 = vunpack.c.l.s4 1983009808
          %v600 = vunpack.c.0.s8 %v599
          %v601 = vlaneseq
          %v602 = vshrl.u32 %v601, 7
          %v603 = vsub.s32 %v600, %v602
          %v604 = vrot.slane %v596, %v603
          %v606 = vunpack.c.l.s4 1983009808
          %v607 = vunpack.c.0.s8 %v606
          %v608 = vlaneseq
          %v609 = vshrl.u32 %v608, 7
          %v610 = vsub.s32 %v607, %v609
          %v611 = vrot.slane %v597, %v610
          %v612 = vcombine.low %v588, %v594
          %v613 = vcombine.high %v588, %v594
          %v615 = vunpack.c.l.s4 1983009808
          %v616 = vunpack.c.0.s8 %v615
          %v617 = vlaneseq
          %v618 = vshrl.u32 %v617, 7
          %v619 = vsub.s32 %v616, %v618
          %v620 = vrot.slane %v612, %v619
          %v622 = vunpack.c.l.s4 1983009808
          %v623 = vunpack.c.0.s8 %v622
          %v624 = vlaneseq
          %v625 = vshrl.u32 %v624, 7
          %v626 = vsub.s32 %v623, %v625
          %v627 = vrot.slane %v613, %v626
          %v628 = vcombine.low %v604, %v620
          %v629 = vcombine.high %v604, %v620
          %v631 = vunpack.c.l.s4 1934713408
          %v632 = vunpack.c.0.s8 %v631
          %v633 = vlaneseq
          %v634 = vshrl.u32 %v633, 7
          %v635 = vsub.s32 %v632, %v634
          %v636 = vrot.slane %v628, %v635
          %v638 = vunpack.c.l.s4 1934713408
          %v639 = vunpack.c.0.s8 %v638
          %v640 = vlaneseq
          %v641 = vshrl.u32 %v640, 7
          %v642 = vsub.s32 %v639, %v641
          %v643 = vrot.slane %v629, %v642
          %v644 = vcombine.low %v611, %v627
          %v645 = vcombine.high %v611, %v627
          %v647 = vunpack.c.l.s4 1934713408
          %v648 = vunpack.c.0.s8 %v647
          %v649 = vlaneseq
          %v650 = vshrl.u32 %v649, 7
          %v651 = vsub.s32 %v648, %v650
          %v652 = vrot.slane %v644, %v651
          %v654 = vunpack.c.l.s4 1934713408
          %v655 = vunpack.c.0.s8 %v654
          %v656 = vlaneseq
          %v657 = vshrl.u32 %v656, 7
          %v658 = vsub.s32 %v655, %v657
          %v659 = vrot.slane %v645, %v658
          %v660 = vcombine.high %v636, 0.0
          %v661 = vcombine.high %v643, 0.0
          %v662 = vcombine.high %v652, 0.0
          %v663 = vcombine.high %v659, 0.0
          %664 = vrot.lane.b32.xlu0 %v581, 96
          %v665 = vpop.permute.xlu0 %664
          %666 = vrot.lane.b32.xlu0 %v588, 96
          %v667 = vpop.permute.xlu0 %666
          %668 = vrot.lane.b32.xlu0 %v591, 96
          %v669 = vpop.permute.xlu0 %668
          %670 = vrot.lane.b32.xlu0 %v594, 96
          %v671 = vpop.permute.xlu0 %670
          %v676 = vcombine.low %v665, %v669
          %v677 = vcombine.high %v665, %v669
          %v679 = vunpack.c.l.s4 1983009808
          %v680 = vunpack.c.0.s8 %v679
          %v681 = vlaneseq
          %v682 = vshrl.u32 %v681, 7
          %v683 = vsub.s32 %v680, %v682
          %v684 = vrot.slane %v676, %v683
          %v686 = vunpack.c.l.s4 1983009808
          %v687 = vunpack.c.0.s8 %v686
          %v688 = vlaneseq
          %v689 = vshrl.u32 %v688, 7
          %v690 = vsub.s32 %v687, %v689
          %v691 = vrot.slane %v677, %v690
          %v692 = vcombine.low %v667, %v671
          %v693 = vcombine.high %v667, %v671
          %v695 = vunpack.c.l.s4 1983009808
          %v696 = vunpack.c.0.s8 %v695
          %v697 = vlaneseq
          %v698 = vshrl.u32 %v697, 7
          %v699 = vsub.s32 %v696, %v698
          %v700 = vrot.slane %v692, %v699
          %v702 = vunpack.c.l.s4 1983009808
          %v703 = vunpack.c.0.s8 %v702
          %v704 = vlaneseq
          %v705 = vshrl.u32 %v704, 7
          %v706 = vsub.s32 %v703, %v705
          %v707 = vrot.slane %v693, %v706
          %v708 = vcombine.low %v684, %v700
          %v709 = vcombine.high %v684, %v700
          %v711 = vunpack.c.l.s4 1934713408
          %v712 = vunpack.c.0.s8 %v711
          %v713 = vlaneseq
          %v714 = vshrl.u32 %v713, 7
          %v715 = vsub.s32 %v712, %v714
          %v716 = vrot.slane %v708, %v715
          %v718 = vunpack.c.l.s4 1934713408
          %v719 = vunpack.c.0.s8 %v718
          %v720 = vlaneseq
          %v721 = vshrl.u32 %v720, 7
          %v722 = vsub.s32 %v719, %v721
          %v723 = vrot.slane %v709, %v722
          %v724 = vcombine.low %v691, %v707
          %v725 = vcombine.high %v691, %v707
          %v727 = vunpack.c.l.s4 1934713408
          %v728 = vunpack.c.0.s8 %v727
          %v729 = vlaneseq
          %v730 = vshrl.u32 %v729, 7
          %v731 = vsub.s32 %v728, %v730
          %v732 = vrot.slane %v724, %v731
          %v734 = vunpack.c.l.s4 1934713408
          %v735 = vunpack.c.0.s8 %v734
          %v736 = vlaneseq
          %v737 = vshrl.u32 %v736, 7
          %v738 = vsub.s32 %v735, %v737
          %v739 = vrot.slane %v725, %v738
          %v740 = vcombine.high %v716, 0.0
          %v741 = vcombine.high %v723, 0.0
          %v742 = vcombine.high %v732, 0.0
          %v743 = vcombine.high %v739, 0.0
          %v744 = vcombine.low %v636, %v643
          %v746 = vunpack.c.l.s4 1983009808
          %v747 = vunpack.c.0.s8 %v746
          %v748 = vlaneseq
          %v749 = vshrl.u32 %v748, 7
          %v750 = vsub.s32 %v747, %v749
          %v751 = vrot.slane %v744, %v750
          %v752 = vcombine.low %v660, %v661
          %v754 = vunpack.c.l.s4 1983009808
          %v755 = vunpack.c.0.s8 %v754
          %v756 = vlaneseq
          %v757 = vshrl.u32 %v756, 7
          %v758 = vsub.s32 %v755, %v757
          %v759 = vrot.slane %v752, %v758
          %v760 = vcombine.low %v652, %v659
          %v762 = vunpack.c.l.s4 1983009808
          %v763 = vunpack.c.0.s8 %v762
          %v764 = vlaneseq
          %v765 = vshrl.u32 %v764, 7
          %v766 = vsub.s32 %v763, %v765
          %v767 = vrot.slane %v760, %v766
          %v768 = vcombine.low %v662, %v663
          %v770 = vunpack.c.l.s4 1983009808
          %v771 = vunpack.c.0.s8 %v770
          %v772 = vlaneseq
          %v773 = vshrl.u32 %v772, 7
          %v774 = vsub.s32 %v771, %v773
          %v775 = vrot.slane %v768, %v774
          %v776 = vcombine.low %v751, %v759
          %v777 = vcombine.high %v751, %v759
          %v779 = vunpack.c.l.s4 1934713408
          %v780 = vunpack.c.0.s8 %v779
          %v781 = vlaneseq
          %v782 = vshrl.u32 %v781, 7
          %v783 = vsub.s32 %v780, %v782
          %v784 = vrot.slane %v776, %v783
          %v786 = vunpack.c.l.s4 1934713408
          %v787 = vunpack.c.0.s8 %v786
          %v788 = vlaneseq
          %v789 = vshrl.u32 %v788, 7
          %v790 = vsub.s32 %v787, %v789
          %v791 = vrot.slane %v777, %v790
          %v792 = vcombine.low %v767, %v775
          %v793 = vcombine.high %v767, %v775
          %v795 = vunpack.c.l.s4 1934713408
          %v796 = vunpack.c.0.s8 %v795
          %v797 = vlaneseq
          %v798 = vshrl.u32 %v797, 7
          %v799 = vsub.s32 %v796, %v798
          %v800 = vrot.slane %v792, %v799
          %v802 = vunpack.c.l.s4 1934713408
          %v803 = vunpack.c.0.s8 %v802
          %v804 = vlaneseq
          %v805 = vshrl.u32 %v804, 7
          %v806 = vsub.s32 %v803, %v805
          %v807 = vrot.slane %v793, %v806
          %v808 = vcombine.low %v784, %v800
          %v809 = vcombine.high %v784, %v800
          %v810 = vcombine.low %v791, %v807
          %v811 = vcombine.high %v791, %v807
          %v812 = vpack.c.bf16 %v808, %v808
          %v813 = vpack.c.bf16 %v809, %v809
          %v814 = vpack.c.bf16 %v810, %v810
          %v815 = vpack.c.bf16 %v811, %v811
          %vm816 = vcmask 60416
          %817 = vst.msk [vmem:[#allocation2] sm:$0xf] %vm816, %v812
          %818 = vst.msk [vmem:[#allocation2 + $0x4] sm:$0xf] %vm816, %v813
          %819 = vst.msk [vmem:[#allocation2 + $0x8] sm:$0xf] %vm816, %v814
          %820 = vst.msk [vmem:[#allocation2 + $0xc] sm:$0xf] %vm816, %v815
          %v821 = vcombine.low %v716, %v723
          %v823 = vunpack.c.l.s4 1983009808
          %v824 = vunpack.c.0.s8 %v823
          %v825 = vlaneseq
          %v826 = vshrl.u32 %v825, 7
          %v827 = vsub.s32 %v824, %v826
          %v828 = vrot.slane %v821, %v827
          %v829 = vcombine.low %v740, %v741
          %v831 = vunpack.c.l.s4 1983009808
          %v832 = vunpack.c.0.s8 %v831
          %v833 = vlaneseq
          %v834 = vshrl.u32 %v833, 7
          %v835 = vsub.s32 %v832, %v834
          %v836 = vrot.slane %v829, %v835
          %v837 = vcombine.low %v732, %v739
          %v839 = vunpack.c.l.s4 1983009808
          %v840 = vunpack.c.0.s8 %v839
          %v841 = vlaneseq
          %v842 = vshrl.u32 %v841, 7
          %v843 = vsub.s32 %v840, %v842
          %v844 = vrot.slane %v837, %v843
          %v845 = vcombine.low %v742, %v743
          %v847 = vunpack.c.l.s4 1983009808
          %v848 = vunpack.c.0.s8 %v847
          %v849 = vlaneseq
          %v850 = vshrl.u32 %v849, 7
          %v851 = vsub.s32 %v848, %v850
          %v852 = vrot.slane %v845, %v851
          %v853 = vcombine.low %v828, %v836
          %v854 = vcombine.high %v828, %v836
          %v856 = vunpack.c.l.s4 1934713408
          %v857 = vunpack.c.0.s8 %v856
          %v858 = vlaneseq
          %v859 = vshrl.u32 %v858, 7
          %v860 = vsub.s32 %v857, %v859
          %v861 = vrot.slane %v853, %v860
          %v863 = vunpack.c.l.s4 1934713408
          %v864 = vunpack.c.0.s8 %v863
          %v865 = vlaneseq
          %v866 = vshrl.u32 %v865, 7
          %v867 = vsub.s32 %v864, %v866
          %v868 = vrot.slane %v854, %v867
          %v869 = vcombine.low %v844, %v852
          %v870 = vcombine.high %v844, %v852
          %v872 = vunpack.c.l.s4 1934713408
          %v873 = vunpack.c.0.s8 %v872
          %v874 = vlaneseq
          %v875 = vshrl.u32 %v874, 7
          %v876 = vsub.s32 %v873, %v875
          %v877 = vrot.slane %v869, %v876
          %v879 = vunpack.c.l.s4 1934713408
          %v880 = vunpack.c.0.s8 %v879
          %v881 = vlaneseq
          %v882 = vshrl.u32 %v881, 7
          %v883 = vsub.s32 %v880, %v882
          %v884 = vrot.slane %v870, %v883
          %v885 = vcombine.low %v861, %v877
          %v886 = vcombine.high %v861, %v877
          %v887 = vcombine.low %v868, %v884
          %v888 = vcombine.high %v868, %v884
          %v889 = vpack.c.bf16 %v885, %v885
          %v890 = vpack.c.bf16 %v886, %v886
          %v891 = vpack.c.bf16 %v887, %v887
          %v892 = vpack.c.bf16 %v888, %v888
          %893 = vst.msk [vmem:[#allocation3] sm:$0xf] %vm816, %v889
          %894 = vst.msk [vmem:[#allocation3 + $0x4] sm:$0xf] %vm816, %v890
          %895 = vst.msk [vmem:[#allocation3 + $0x8] sm:$0xf] %vm816, %v891
          %896 = vst.msk [vmem:[#allocation3 + $0xc] sm:$0xf] %vm816, %v892
        $region88: #{tpu_custom_call.1} parent=63 // pred_fallthru
          _
        %v897 = vpack.c.bf16 %v512, %v512
        %v898 = vld [vmem:[#allocation9] sm:$0xf]
        %v899 = vld [vmem:[#allocation9 + $0x4] sm:$0xf]
        %v900 = vld [vmem:[#allocation9 + $0x8] sm:$0xf]
        %v901 = vld [vmem:[#allocation9 + $0xc] sm:$0xf]
        %v902 = vld [vmem:[#allocation10] sm:$0x1]
        %v904 = vlaneseq
        %v905 = vshrl.u32 %v904, 7
        %v906 = vsub.s32 0, %v905
        %v907 = vrot.slane %v902, %v906
        %v913 = vunpack.c.l.b16 %v898
        %v914 = vunpack.c.l.b16 %v899
        %v915 = vunpack.c.l.b16 %v900
        %v916 = vunpack.c.l.b16 %v901
        %v917 = vpack.c.b16 %v914, %v913
        %v918 = vpack.c.b16 %v916, %v915
        %vm921 = vcmask 261120
        %v923 = vsel %vm921, %v897, 0
        %925 = vmatprep.subr.bf16.mxu0 0
        %926 = vmatpush1.bf16.msra.mxu0 %v917
        %927 = vmatprep.subr.bf16.mxu0 0
        %928 = vmatpush1.bf16.msra.mxu0 %v918
        %929 = vmatprep.subr.bf16.mxu0 0
        %930 = vmatpush1.bf16.msra.mxu0 0
        %931 = vmatprep.subr.bf16.mxu0 0
        %932 = vmatpush1.bf16.msra.mxu0 0
        %933 = vmatprep.subr.bf16.mxu0 0
        %934 = vmatpush1.bf16.msra.mxu0 0
        %935 = vmatprep.subr.bf16.mxu0 0
        %936 = vmatpush1.bf16.msra.mxu0 0
        %937 = vmatprep.subr.bf16.mxu0 0
        %938 = vmatpush1.bf16.msra.mxu0 0
        %939 = vmatprep.subr.bf16.mxu0 0
        %940 = vmatpush1.bf16.msra.mxu0 0
        %941 = vmatprep.subr.bf16.mxu0 0
        %942 = vmatpush1.bf16.msra.mxu0 0
        %943 = vmatprep.subr.bf16.mxu0 0
        %944 = vmatpush1.bf16.msra.mxu0 0
        %945 = vmatprep.subr.bf16.mxu0 0
        %946 = vmatpush1.bf16.msra.mxu0 0
        %947 = vmatprep.subr.bf16.mxu0 0
        %948 = vmatpush1.bf16.msra.mxu0 0
        %949 = vmatprep.subr.bf16.mxu0 0
        %950 = vmatpush1.bf16.msra.mxu0 0
        %951 = vmatprep.subr.bf16.mxu0 0
        %952 = vmatpush1.bf16.msra.mxu0 0
        %953 = vmatprep.subr.bf16.mxu0 0
        %954 = vmatpush1.bf16.msra.mxu0 0
        %955 = vmatprep.subr.bf16.mxu0 0
        %956 = vmatpush1.bf16.msra.mxu0 0
        %957 = vmatprep.mubr.bf16.mxu0 0
        %958 = vmatmul.mubr.bf16.gmra.mrb[0].mxu0 %v923
        %v959 = vpop.f32.mrb[0].mxu0
        %v960 = vadd.f32 %v907, %v959
        %v961 = vpop.f32.mrb[0].mxu0
        %v962 = vpop.f32.mrb[0].mxu0
        %v963 = vpop.f32.mrb[0].mxu0
        %964 = vdwg.mxu0
        %v965 = vmul.f32 %v960, 0.35355338
        %967 = vrot.lane.b32.xlu0 %v965, 120
        %v968 = vpop.permute.xlu0 %967
        %970 = vrot.lane.b32.xlu0 %v965, 112
        %v971 = vpop.permute.xlu0 %970
        %973 = vrot.lane.b32.xlu0 %v965, 104
        %v974 = vpop.permute.xlu0 %973
        %v976 = vcombine.low %v965, %v971
        %v977 = vcombine.high %v965, %v971
        %v979 = vunpack.c.l.s4 1983009808
        %v980 = vunpack.c.0.s8 %v979
        %v981 = vlaneseq
        %v982 = vshrl.u32 %v981, 7
        %v983 = vsub.s32 %v980, %v982
        %v984 = vrot.slane %v976, %v983
        %v986 = vunpack.c.l.s4 1983009808
        %v987 = vunpack.c.0.s8 %v986
        %v988 = vlaneseq
        %v989 = vshrl.u32 %v988, 7
        %v990 = vsub.s32 %v987, %v989
        %v991 = vrot.slane %v977, %v990
        %v992 = vcombine.low %v968, %v974
        %v993 = vcombine.high %v968, %v974
        %v995 = vunpack.c.l.s4 1983009808
        %v996 = vunpack.c.0.s8 %v995
        %v997 = vlaneseq
        %v998 = vshrl.u32 %v997, 7
        %v999 = vsub.s32 %v996, %v998
        %v1000 = vrot.slane %v992, %v999
        %v1002 = vunpack.c.l.s4 1983009808
        %v1003 = vunpack.c.0.s8 %v1002
        %v1004 = vlaneseq
        %v1005 = vshrl.u32 %v1004, 7
        %v1006 = vsub.s32 %v1003, %v1005
        %v1007 = vrot.slane %v993, %v1006
        %v1008 = vcombine.low %v984, %v1000
        %v1009 = vcombine.high %v984, %v1000
        %v1011 = vunpack.c.l.s4 1934713408
        %v1012 = vunpack.c.0.s8 %v1011
        %v1013 = vlaneseq
        %v1014 = vshrl.u32 %v1013, 7
        %v1015 = vsub.s32 %v1012, %v1014
        %v1016 = vrot.slane %v1008, %v1015
        %v1018 = vunpack.c.l.s4 1934713408
        %v1019 = vunpack.c.0.s8 %v1018
        %v1020 = vlaneseq
        %v1021 = vshrl.u32 %v1020, 7
        %v1022 = vsub.s32 %v1019, %v1021
        %v1023 = vrot.slane %v1009, %v1022
        %v1024 = vcombine.low %v991, %v1007
        %v1025 = vcombine.high %v991, %v1007
        %v1027 = vunpack.c.l.s4 1934713408
        %v1028 = vunpack.c.0.s8 %v1027
        %v1029 = vlaneseq
        %v1030 = vshrl.u32 %v1029, 7
        %v1031 = vsub.s32 %v1028, %v1030
        %v1032 = vrot.slane %v1024, %v1031
        %v1034 = vunpack.c.l.s4 1934713408
        %v1035 = vunpack.c.0.s8 %v1034
        %v1036 = vlaneseq
        %v1037 = vshrl.u32 %v1036, 7
        %v1038 = vsub.s32 %v1035, %v1037
        %v1039 = vrot.slane %v1025, %v1038
        %v1040 = vcombine.high %v1016, 0.0
        %v1041 = vcombine.high %v1023, 0.0
        %v1042 = vcombine.high %v1032, 0.0
        %v1043 = vcombine.high %v1039, 0.0
        %v1044 = vcombine.low %v1016, %v1023
        %v1046 = vunpack.c.l.s4 1983009808
        %v1047 = vunpack.c.0.s8 %v1046
        %v1048 = vlaneseq
        %v1049 = vshrl.u32 %v1048, 7
        %v1050 = vsub.s32 %v1047, %v1049
        %v1051 = vrot.slane %v1044, %v1050
        %v1052 = vcombine.low %v1040, %v1041
        %v1054 = vunpack.c.l.s4 1983009808
        %v1055 = vunpack.c.0.s8 %v1054
        %v1056 = vlaneseq
        %v1057 = vshrl.u32 %v1056, 7
        %v1058 = vsub.s32 %v1055, %v1057
        %v1059 = vrot.slane %v1052, %v1058
        %v1060 = vcombine.low %v1032, %v1039
        %v1062 = vunpack.c.l.s4 1983009808
        %v1063 = vunpack.c.0.s8 %v1062
        %v1064 = vlaneseq
        %v1065 = vshrl.u32 %v1064, 7
        %v1066 = vsub.s32 %v1063, %v1065
        %v1067 = vrot.slane %v1060, %v1066
        %v1068 = vcombine.low %v1042, %v1043
        %v1070 = vunpack.c.l.s4 1983009808
        %v1071 = vunpack.c.0.s8 %v1070
        %v1072 = vlaneseq
        %v1073 = vshrl.u32 %v1072, 7
        %v1074 = vsub.s32 %v1071, %v1073
        %v1075 = vrot.slane %v1068, %v1074
        %v1076 = vcombine.low %v1051, %v1059
        %v1077 = vcombine.high %v1051, %v1059
        %v1079 = vunpack.c.l.s4 1934713408
        %v1080 = vunpack.c.0.s8 %v1079
        %v1081 = vlaneseq
        %v1082 = vshrl.u32 %v1081, 7
        %v1083 = vsub.s32 %v1080, %v1082
        %v1084 = vrot.slane %v1076, %v1083
        %v1086 = vunpack.c.l.s4 1934713408
        %v1087 = vunpack.c.0.s8 %v1086
        %v1088 = vlaneseq
        %v1089 = vshrl.u32 %v1088, 7
        %v1090 = vsub.s32 %v1087, %v1089
        %v1091 = vrot.slane %v1077, %v1090
        %v1092 = vcombine.low %v1067, %v1075
        %v1093 = vcombine.high %v1067, %v1075
        %v1095 = vunpack.c.l.s4 1934713408
        %v1096 = vunpack.c.0.s8 %v1095
        %v1097 = vlaneseq
        %v1098 = vshrl.u32 %v1097, 7
        %v1099 = vsub.s32 %v1096, %v1098
        %v1100 = vrot.slane %v1092, %v1099
        %v1102 = vunpack.c.l.s4 1934713408
        %v1103 = vunpack.c.0.s8 %v1102
        %v1104 = vlaneseq
        %v1105 = vshrl.u32 %v1104, 7
        %v1106 = vsub.s32 %v1103, %v1105
        %v1107 = vrot.slane %v1093, %v1106
        %v1108 = vcombine.low %v1084, %v1100
        %v1109 = vcombine.high %v1084, %v1100
        %v1110 = vcombine.low %v1091, %v1107
        %v1111 = vcombine.high %v1091, %v1107
        %v1112 = vpack.c.bf16 %v1108, %v1108
        %v1113 = vpack.c.bf16 %v1109, %v1109
        %v1114 = vpack.c.bf16 %v1110, %v1110
        %v1115 = vpack.c.bf16 %v1111, %v1111
        %v1116 = vld [vmem:[#allocation2] sm:$0xf]
        %v1117 = vld [vmem:[#allocation2 + $0x4] sm:$0xf]
        %v1118 = vld [vmem:[#allocation2 + $0x8] sm:$0xf]
        %v1119 = vld [vmem:[#allocation2 + $0xc] sm:$0xf]
        %v1120 = vld [vmem:[%s510] sm:$0x1]
        %v1121 = vsub.f32 1.0, %v1120
        %v1122 = vmul.f32 %v1121, -10000.0
        %v1124 = vlaneseq
        %v1125 = vshrl.u32 %v1124, 7
        %v1126 = vsub.s32 0, %v1125
        %v1127 = vrot.slane %v1122, %v1126
        %vm1129 = vcmask 64512
        %v1131 = vsel %vm1129, %v1112, 0
        %v1134 = vsel %vm1129, %v1116, 0
        %1136 = vmatprep.subr.bf16.mxu0 0
        %1137 = vmatpush1.bf16.xpose.msra.mxu0 %v1134
        %1138 = vmatprep.subr.bf16.mxu0 0
        %1139 = vmatpush1.bf16.xpose.msra.mxu0 0
        %1140 = vmatprep.subr.bf16.mxu0 0
        %1141 = vmatpush1.bf16.xpose.msra.mxu0 0
        %1142 = vmatprep.subr.bf16.mxu0 0
        %1143 = vmatpush1.bf16.xpose.msra.mxu0 0
        %1144 = vmatprep.subr.bf16.mxu0 0
        %1145 = vmatpush1.bf16.xpose.msra.mxu0 0
        %1146 = vmatprep.subr.bf16.mxu0 0
        %1147 = vmatpush1.bf16.xpose.msra.mxu0 0
        %1148 = vmatprep.subr.bf16.mxu0 0
        %1149 = vmatpush1.bf16.xpose.msra.mxu0 0
        %1150 = vmatprep.subr.bf16.mxu0 0
        %1151 = vmatpush1.bf16.xpose.msra.mxu0 0
        %1152 = vmatprep.subr.bf16.mxu0 0
        %1153 = vmatpush1.bf16.xpose.msra.mxu0 0
        %1154 = vmatprep.subr.bf16.mxu0 0
        %1155 = vmatpush1.bf16.xpose.msra.mxu0 0
        %1156 = vmatprep.subr.bf16.mxu0 0
        %1157 = vmatpush1.bf16.xpose.msra.mxu0 0
        %1158 = vmatprep.subr.bf16.mxu0 0
        %1159 = vmatpush1.bf16.xpose.msra.mxu0 0
        %1160 = vmatprep.subr.bf16.mxu0 0
        %1161 = vmatpush1.bf16.xpose.msra.mxu0 0
        %1162 = vmatprep.subr.bf16.mxu0 0
        %1163 = vmatpush1.bf16.xpose.msra.mxu0 0
        %1164 = vmatprep.subr.bf16.mxu0 0
        %1165 = vmatpush1.bf16.xpose.msra.mxu0 0
        %1166 = vmatprep.subr.bf16.mxu0 0
        %1167 = vmatpush1.bf16.xpose.msra.mxu0 0
        %1168 = vmatprep.mubr.bf16.mxu0 0
        %1169 = vmatmul.mubr.bf16.gmra.mrb[0].mxu0 %v1131
        %v1170 = vpop.f32.mrb[0].mxu0
        %v1171 = vadd.f32 %v1127, %v1170
        %v1172 = vpop.f32.mrb[0].mxu0
        %v1173 = vpop.f32.mrb[0].mxu0
        %v1174 = vpop.f32.mrb[0].mxu0
        %1175 = vdwg.mxu0
        %v1177 = vsel %vm1129, %v1113, 0
        %v1180 = vsel %vm1129, %v1117, 0
        %1182 = vmatprep.subr.bf16.mxu0 0
        %1183 = vmatpush1.bf16.xpose.msra.mxu0 %v1180
        %1184 = vmatprep.subr.bf16.mxu0 0
        %1185 = vmatpush1.bf16.xpose.msra.mxu0 0
        %1186 = vmatprep.subr.bf16.mxu0 0
        %1187 = vmatpush1.bf16.xpose.msra.mxu0 0
        %1188 = vmatprep.subr.bf16.mxu0 0
        %1189 = vmatpush1.bf16.xpose.msra.mxu0 0
        %1190 = vmatprep.subr.bf16.mxu0 0
        %1191 = vmatpush1.bf16.xpose.msra.mxu0 0
        %1192 = vmatprep.subr.bf16.mxu0 0
        %1193 = vmatpush1.bf16.xpose.msra.mxu0 0
        %1194 = vmatprep.subr.bf16.mxu0 0
        %1195 = vmatpush1.bf16.xpose.msra.mxu0 0
        %1196 = vmatprep.subr.bf16.mxu0 0
        %1197 = vmatpush1.bf16.xpose.msra.mxu0 0
        %1198 = vmatprep.subr.bf16.mxu0 0
        %1199 = vmatpush1.bf16.xpose.msra.mxu0 0
        %1200 = vmatprep.subr.bf16.mxu0 0
        %1201 = vmatpush1.bf16.xpose.msra.mxu0 0
        %1202 = vmatprep.subr.bf16.mxu0 0
        %1203 = vmatpush1.bf16.xpose.msra.mxu0 0
        %1204 = vmatprep.subr.bf16.mxu0 0
        %1205 = vmatpush1.bf16.xpose.msra.mxu0 0
        %1206 = vmatprep.subr.bf16.mxu0 0
        %1207 = vmatpush1.bf16.xpose.msra.mxu0 0
        %1208 = vmatprep.subr.bf16.mxu0 0
        %1209 = vmatpush1.bf16.xpose.msra.mxu0 0
        %1210 = vmatprep.subr.bf16.mxu0 0
        %1211 = vmatpush1.bf16.xpose.msra.mxu0 0
        %1212 = vmatprep.subr.bf16.mxu0 0
        %1213 = vmatpush1.bf16.xpose.msra.mxu0 0
        %1214 = vmatprep.mubr.bf16.mxu0 0
        %1215 = vmatmul.mubr.bf16.gmra.mrb[0].mxu0 %v1177
        %v1216 = vpop.f32.mrb[0].mxu0
        %v1217 = vadd.f32 %v1127, %v1216
        %v1218 = vpop.f32.mrb[0].mxu0
        %v1219 = vpop.f32.mrb[0].mxu0
        %v1220 = vpop.f32.mrb[0].mxu0
        %1221 = vdwg.mxu0
        %v1223 = vsel %vm1129, %v1114, 0
        %v1226 = vsel %vm1129, %v1118, 0
        %1228 = vmatprep.subr.bf16.mxu0 0
        %1229 = vmatpush1.bf16.xpose.msra.mxu0 %v1226
        %1230 = vmatprep.subr.bf16.mxu0 0
        %1231 = vmatpush1.bf16.xpose.msra.mxu0 0
        %1232 = vmatprep.subr.bf16.mxu0 0
        %1233 = vmatpush1.bf16.xpose.msra.mxu0 0
        %1234 = vmatprep.subr.bf16.mxu0 0
        %1235 = vmatpush1.bf16.xpose.msra.mxu0 0
        %1236 = vmatprep.subr.bf16.mxu0 0
        %1237 = vmatpush1.bf16.xpose.msra.mxu0 0
        %1238 = vmatprep.subr.bf16.mxu0 0
        %1239 = vmatpush1.bf16.xpose.msra.mxu0 0
        %1240 = vmatprep.subr.bf16.mxu0 0
        %1241 = vmatpush1.bf16.xpose.msra.mxu0 0
        %1242 = vmatprep.subr.bf16.mxu0 0
        %1243 = vmatpush1.bf16.xpose.msra.mxu0 0
        %1244 = vmatprep.subr.bf16.mxu0 0
        %1245 = vmatpush1.bf16.xpose.msra.mxu0 0
        %1246 = vmatprep.subr.bf16.mxu0 0
        %1247 = vmatpush1.bf16.xpose.msra.mxu0 0
        %1248 = vmatprep.subr.bf16.mxu0 0
        %1249 = vmatpush1.bf16.xpose.msra.mxu0 0
        %1250 = vmatprep.subr.bf16.mxu0 0
        %1251 = vmatpush1.bf16.xpose.msra.mxu0 0
        %1252 = vmatprep.subr.bf16.mxu0 0
        %1253 = vmatpush1.bf16.xpose.msra.mxu0 0
        %1254 = vmatprep.subr.bf16.mxu0 0
        %1255 = vmatpush1.bf16.xpose.msra.mxu0 0
        %1256 = vmatprep.subr.bf16.mxu0 0
        %1257 = vmatpush1.bf16.xpose.msra.mxu0 0
        %1258 = vmatprep.subr.bf16.mxu0 0
        %1259 = vmatpush1.bf16.xpose.msra.mxu0 0
        %1260 = vmatprep.mubr.bf16.mxu0 0
        %1261 = vmatmul.mubr.bf16.gmra.mrb[0].mxu0 %v1223
        %v1262 = vpop.f32.mrb[0].mxu0
        %v1263 = vadd.f32 %v1127, %v1262
        %v1264 = vpop.f32.mrb[0].mxu0
        %v1265 = vpop.f32.mrb[0].mxu0
        %v1266 = vpop.f32.mrb[0].mxu0
        %1267 = vdwg.mxu0
        %v1269 = vsel %vm1129, %v1115, 0
        %v1272 = vsel %vm1129, %v1119, 0
        %1274 = vmatprep.subr.bf16.mxu0 0
        %1275 = vmatpush1.bf16.xpose.msra.mxu0 %v1272
        %1276 = vmatprep.subr.bf16.mxu0 0
        %1277 = vmatpush1.bf16.xpose.msra.mxu0 0
        %1278 = vmatprep.subr.bf16.mxu0 0
        %1279 = vmatpush1.bf16.xpose.msra.mxu0 0
        %1280 = vmatprep.subr.bf16.mxu0 0
        %1281 = vmatpush1.bf16.xpose.msra.mxu0 0
        %1282 = vmatprep.subr.bf16.mxu0 0
        %1283 = vmatpush1.bf16.xpose.msra.mxu0 0
        %1284 = vmatprep.subr.bf16.mxu0 0
        %1285 = vmatpush1.bf16.xpose.msra.mxu0 0
        %1286 = vmatprep.subr.bf16.mxu0 0
        %1287 = vmatpush1.bf16.xpose.msra.mxu0 0
        %1288 = vmatprep.subr.bf16.mxu0 0
        %1289 = vmatpush1.bf16.xpose.msra.mxu0 0
        %1290 = vmatprep.subr.bf16.mxu0 0
        %1291 = vmatpush1.bf16.xpose.msra.mxu0 0
        %1292 = vmatprep.subr.bf16.mxu0 0
        %1293 = vmatpush1.bf16.xpose.msra.mxu0 0
        %1294 = vmatprep.subr.bf16.mxu0 0
        %1295 = vmatpush1.bf16.xpose.msra.mxu0 0
        %1296 = vmatprep.subr.bf16.mxu0 0
        %1297 = vmatpush1.bf16.xpose.msra.mxu0 0
        %1298 = vmatprep.subr.bf16.mxu0 0
        %1299 = vmatpush1.bf16.xpose.msra.mxu0 0
        %1300 = vmatprep.subr.bf16.mxu0 0
        %1301 = vmatpush1.bf16.xpose.msra.mxu0 0
        %1302 = vmatprep.subr.bf16.mxu0 0
        %1303 = vmatpush1.bf16.xpose.msra.mxu0 0
        %1304 = vmatprep.subr.bf16.mxu0 0
        %1305 = vmatpush1.bf16.xpose.msra.mxu0 0
        %1306 = vmatprep.mubr.bf16.mxu0 0
        %1307 = vmatmul.mubr.bf16.gmra.mrb[0].mxu0 %v1269
        %v1308 = vpop.f32.mrb[0].mxu0
        %v1309 = vadd.f32 %v1127, %v1308
        %v1310 = vpop.f32.mrb[0].mxu0
        %v1311 = vpop.f32.mrb[0].mxu0
        %v1312 = vpop.f32.mrb[0].mxu0
        %1313 = vdwg.mxu0
        %v1314 = vsel %vm1129, %v1171, -inf
        %1315 = vmax.xlane.f32.xlu0 %v1314
        %v1316 = vpop.xlane.xlu0 %1315
        %v1317 = vsel %vm1129, %v1217, -inf
        %1318 = vmax.xlane.f32.xlu0 %v1317
        %v1319 = vpop.xlane.xlu0 %1318
        %v1320 = vsel %vm1129, %v1263, -inf
        %1321 = vmax.xlane.f32.xlu0 %v1320
        %v1322 = vpop.xlane.xlu0 %1321
        %v1323 = vsel %vm1129, %v1309, -inf
        %1324 = vmax.xlane.f32.xlu0 %v1323
        %v1325 = vpop.xlane.xlu0 %1324
        %v1326 = vsub.f32 %v1171, %v1316
        %v1327 = vsub.f32 %v1217, %v1319
        %v1328 = vsub.f32 %v1263, %v1322
        %v1329 = vsub.f32 %v1309, %v1325
        %v1330 = vmul.f32 %v1326, 1.442695
        %v1331 = vpow.pop %v1330
        %v1332 = vmul.f32 %v1327, 1.442695
        %v1333 = vpow.pop %v1332
        %v1334 = vmul.f32 %v1328, 1.442695
        %v1335 = vpow.pop %v1334
        %v1336 = vmul.f32 %v1329, 1.442695
        %v1337 = vpow.pop %v1336
        %v1338 = vsel %vm1129, %v1331, 0.0
        %1339 = vadd.xlane.f32.xlu0 %v1338
        %v1340 = vpop.xlane.xlu0 %1339
        %v1341 = vsel %vm1129, %v1333, 0.0
        %1342 = vadd.xlane.f32.xlu0 %v1341
        %v1343 = vpop.xlane.xlu0 %1342
        %v1344 = vsel %vm1129, %v1335, 0.0
        %1345 = vadd.xlane.f32.xlu0 %v1344
        %v1346 = vpop.xlane.xlu0 %1345
        %v1347 = vsel %vm1129, %v1337, 0.0
        %1348 = vadd.xlane.f32.xlu0 %v1347
        %v1349 = vpop.xlane.xlu0 %1348
        %v1350 = vrcp.pop %v1340
        %v1351 = vrcp.pop %v1343
        %v1352 = vrcp.pop %v1346
        %v1353 = vrcp.pop %v1349
        %v1354 = vmul.f32 %v1331, %v1350
        %v1355 = vmul.f32 %v1333, %v1351
        %v1356 = vmul.f32 %v1335, %v1352
        %v1357 = vmul.f32 %v1337, %v1353
        %v1358 = vpack.c.bf16 %v1354, %v1354
        %v1359 = vpack.c.bf16 %v1355, %v1355
        %v1360 = vpack.c.bf16 %v1356, %v1356
        %v1361 = vpack.c.bf16 %v1357, %v1357
        %v1362 = vld [vmem:[#allocation3] sm:$0xf]
        %v1363 = vld [vmem:[#allocation3 + $0x4] sm:$0xf]
        %v1364 = vld [vmem:[#allocation3 + $0x8] sm:$0xf]
        %v1365 = vld [vmem:[#allocation3 + $0xc] sm:$0xf]
        %v1367 = vsel %vm1129, %v1358, 0
        %vm1369 = vcmask 1043456
        %v1371 = vsel %vm1369, %v1362, 0
        %1373 = vmatprep.subr.bf16.mxu0 0
        %1374 = vmatpush1.bf16.msra.mxu0 %v1371
        %1375 = vmatprep.subr.bf16.mxu0 0
        %1376 = vmatpush1.bf16.msra.mxu0 0
        %1377 = vmatprep.subr.bf16.mxu0 0
        %1378 = vmatpush1.bf16.msra.mxu0 0
        %1379 = vmatprep.subr.bf16.mxu0 0
        %1380 = vmatpush1.bf16.msra.mxu0 0
        %1381 = vmatprep.subr.bf16.mxu0 0
        %1382 = vmatpush1.bf16.msra.mxu0 0
        %1383 = vmatprep.subr.bf16.mxu0 0
        %1384 = vmatpush1.bf16.msra.mxu0 0
        %1385 = vmatprep.subr.bf16.mxu0 0
        %1386 = vmatpush1.bf16.msra.mxu0 0
        %1387 = vmatprep.subr.bf16.mxu0 0
        %1388 = vmatpush1.bf16.msra.mxu0 0
        %1389 = vmatprep.subr.bf16.mxu0 0
        %1390 = vmatpush1.bf16.msra.mxu0 0
        %1391 = vmatprep.subr.bf16.mxu0 0
        %1392 = vmatpush1.bf16.msra.mxu0 0
        %1393 = vmatprep.subr.bf16.mxu0 0
        %1394 = vmatpush1.bf16.msra.mxu0 0
        %1395 = vmatprep.subr.bf16.mxu0 0
        %1396 = vmatpush1.bf16.msra.mxu0 0
        %1397 = vmatprep.subr.bf16.mxu0 0
        %1398 = vmatpush1.bf16.msra.mxu0 0
        %1399 = vmatprep.subr.bf16.mxu0 0
        %1400 = vmatpush1.bf16.msra.mxu0 0
        %1401 = vmatprep.subr.bf16.mxu0 0
        %1402 = vmatpush1.bf16.msra.mxu0 0
        %1403 = vmatprep.subr.bf16.mxu0 0
        %1404 = vmatpush1.bf16.msra.mxu0 0
        %1405 = vmatprep.mubr.bf16.mxu0 0
        %1406 = vmatmul.mubr.bf16.gmra.mrb[0].mxu0 %v1367
        %v1407 = vpop.f32.mrb[0].mxu0
        %v1408 = vadd.f32 0.0, %v1407
        %v1409 = vpop.f32.mrb[0].mxu0
        %v1410 = vpop.f32.mrb[0].mxu0
        %v1411 = vpop.f32.mrb[0].mxu0
        %1412 = vdwg.mxu0
        %v1414 = vsel %vm1129, %v1359, 0
        %v1417 = vsel %vm1369, %v1363, 0
        %1419 = vmatprep.subr.bf16.mxu0 0
        %1420 = vmatpush1.bf16.msra.mxu0 %v1417
        %1421 = vmatprep.subr.bf16.mxu0 0
        %1422 = vmatpush1.bf16.msra.mxu0 0
        %1423 = vmatprep.subr.bf16.mxu0 0
        %1424 = vmatpush1.bf16.msra.mxu0 0
        %1425 = vmatprep.subr.bf16.mxu0 0
        %1426 = vmatpush1.bf16.msra.mxu0 0
        %1427 = vmatprep.subr.bf16.mxu0 0
        %1428 = vmatpush1.bf16.msra.mxu0 0
        %1429 = vmatprep.subr.bf16.mxu0 0
        %1430 = vmatpush1.bf16.msra.mxu0 0
        %1431 = vmatprep.subr.bf16.mxu0 0
        %1432 = vmatpush1.bf16.msra.mxu0 0
        %1433 = vmatprep.subr.bf16.mxu0 0
        %1434 = vmatpush1.bf16.msra.mxu0 0
        %1435 = vmatprep.subr.bf16.mxu0 0
        %1436 = vmatpush1.bf16.msra.mxu0 0
        %1437 = vmatprep.subr.bf16.mxu0 0
        %1438 = vmatpush1.bf16.msra.mxu0 0
        %1439 = vmatprep.subr.bf16.mxu0 0
        %1440 = vmatpush1.bf16.msra.mxu0 0
        %1441 = vmatprep.subr.bf16.mxu0 0
        %1442 = vmatpush1.bf16.msra.mxu0 0
        %1443 = vmatprep.subr.bf16.mxu0 0
        %1444 = vmatpush1.bf16.msra.mxu0 0
        %1445 = vmatprep.subr.bf16.mxu0 0
        %1446 = vmatpush1.bf16.msra.mxu0 0
        %1447 = vmatprep.subr.bf16.mxu0 0
        %1448 = vmatpush1.bf16.msra.mxu0 0
        %1449 = vmatprep.subr.bf16.mxu0 0
        %1450 = vmatpush1.bf16.msra.mxu0 0
        %1451 = vmatprep.mubr.bf16.mxu0 0
        %1452 = vmatmul.mubr.bf16.gmra.mrb[0].mxu0 %v1414
        %v1453 = vpop.f32.mrb[0].mxu0
        %v1454 = vadd.f32 0.0, %v1453
        %v1455 = vpop.f32.mrb[0].mxu0
        %v1456 = vpop.f32.mrb[0].mxu0
        %v1457 = vpop.f32.mrb[0].mxu0
        %1458 = vdwg.mxu0
        %v1460 = vsel %vm1129, %v1360, 0
        %v1463 = vsel %vm1369, %v1364, 0
        %1465 = vmatprep.subr.bf16.mxu0 0
        %1466 = vmatpush1.bf16.msra.mxu0 %v1463
        %1467 = vmatprep.subr.bf16.mxu0 0
        %1468 = vmatpush1.bf16.msra.mxu0 0
        %1469 = vmatprep.subr.bf16.mxu0 0
        %1470 = vmatpush1.bf16.msra.mxu0 0
        %1471 = vmatprep.subr.bf16.mxu0 0
        %1472 = vmatpush1.bf16.msra.mxu0 0
        %1473 = vmatprep.subr.bf16.mxu0 0
        %1474 = vmatpush1.bf16.msra.mxu0 0
        %1475 = vmatprep.subr.bf16.mxu0 0
        %1476 = vmatpush1.bf16.msra.mxu0 0
        %1477 = vmatprep.subr.bf16.mxu0 0
        %1478 = vmatpush1.bf16.msra.mxu0 0
        %1479 = vmatprep.subr.bf16.mxu0 0
        %1480 = vmatpush1.bf16.msra.mxu0 0
        %1481 = vmatprep.subr.bf16.mxu0 0
        %1482 = vmatpush1.bf16.msra.mxu0 0
        %1483 = vmatprep.subr.bf16.mxu0 0
        %1484 = vmatpush1.bf16.msra.mxu0 0
        %1485 = vmatprep.subr.bf16.mxu0 0
        %1486 = vmatpush1.bf16.msra.mxu0 0
        %1487 = vmatprep.subr.bf16.mxu0 0
        %1488 = vmatpush1.bf16.msra.mxu0 0
        %1489 = vmatprep.subr.bf16.mxu0 0
        %1490 = vmatpush1.bf16.msra.mxu0 0
        %1491 = vmatprep.subr.bf16.mxu0 0
        %1492 = vmatpush1.bf16.msra.mxu0 0
        %1493 = vmatprep.subr.bf16.mxu0 0
        %1494 = vmatpush1.bf16.msra.mxu0 0
        %1495 = vmatprep.subr.bf16.mxu0 0
        %1496 = vmatpush1.bf16.msra.mxu0 0
        %1497 = vmatprep.mubr.bf16.mxu0 0
        %1498 = vmatmul.mubr.bf16.gmra.mrb[0].mxu0 %v1460
        %v1499 = vpop.f32.mrb[0].mxu0
        %v1500 = vadd.f32 0.0, %v1499
        %v1501 = vpop.f32.mrb[0].mxu0
        %v1502 = vpop.f32.mrb[0].mxu0
        %v1503 = vpop.f32.mrb[0].mxu0
        %1504 = vdwg.mxu0
        %v1506 = vsel %vm1129, %v1361, 0
        %v1509 = vsel %vm1369, %v1365, 0
        %1511 = vmatprep.subr.bf16.mxu0 0
        %1512 = vmatpush1.bf16.msra.mxu0 %v1509
        %1513 = vmatprep.subr.bf16.mxu0 0
        %1514 = vmatpush1.bf16.msra.mxu0 0
        %1515 = vmatprep.subr.bf16.mxu0 0
        %1516 = vmatpush1.bf16.msra.mxu0 0
        %1517 = vmatprep.subr.bf16.mxu0 0
        %1518 = vmatpush1.bf16.msra.mxu0 0
        %1519 = vmatprep.subr.bf16.mxu0 0
        %1520 = vmatpush1.bf16.msra.mxu0 0
        %1521 = vmatprep.subr.bf16.mxu0 0
        %1522 = vmatpush1.bf16.msra.mxu0 0
        %1523 = vmatprep.subr.bf16.mxu0 0
        %1524 = vmatpush1.bf16.msra.mxu0 0
        %1525 = vmatprep.subr.bf16.mxu0 0
        %1526 = vmatpush1.bf16.msra.mxu0 0
        %1527 = vmatprep.subr.bf16.mxu0 0
        %1528 = vmatpush1.bf16.msra.mxu0 0
        %1529 = vmatprep.subr.bf16.mxu0 0
        %1530 = vmatpush1.bf16.msra.mxu0 0
        %1531 = vmatprep.subr.bf16.mxu0 0
        %1532 = vmatpush1.bf16.msra.mxu0 0
        %1533 = vmatprep.subr.bf16.mxu0 0
        %1534 = vmatpush1.bf16.msra.mxu0 0
        %1535 = vmatprep.subr.bf16.mxu0 0
        %1536 = vmatpush1.bf16.msra.mxu0 0
        %1537 = vmatprep.subr.bf16.mxu0 0
        %1538 = vmatpush1.bf16.msra.mxu0 0
        %1539 = vmatprep.subr.bf16.mxu0 0
        %1540 = vmatpush1.bf16.msra.mxu0 0
        %1541 = vmatprep.subr.bf16.mxu0 0
        %1542 = vmatpush1.bf16.msra.mxu0 0
        %1543 = vmatprep.mubr.bf16.mxu0 0
        %1544 = vmatmul.mubr.bf16.gmra.mrb[0].mxu0 %v1506
        %v1545 = vpop.f32.mrb[0].mxu0
        %v1546 = vadd.f32 0.0, %v1545
        %v1547 = vpop.f32.mrb[0].mxu0
        %v1548 = vpop.f32.mrb[0].mxu0
        %v1549 = vpop.f32.mrb[0].mxu0
        %1550 = vdwg.mxu0
        %v1551 = vcombine.low %v1408, %v1500
        %v1552 = vcombine.high %v1408, %v1500
        %v1554 = vunpack.c.l.s4 1983009808
        %v1555 = vunpack.c.0.s8 %v1554
        %v1556 = vlaneseq
        %v1557 = vshrl.u32 %v1556, 7
        %v1558 = vsub.s32 %v1555, %v1557
        %v1559 = vrot.slane %v1551, %v1558
        %v1561 = vunpack.c.l.s4 1983009808
        %v1562 = vunpack.c.0.s8 %v1561
        %v1563 = vlaneseq
        %v1564 = vshrl.u32 %v1563, 7
        %v1565 = vsub.s32 %v1562, %v1564
        %v1566 = vrot.slane %v1552, %v1565
        %v1567 = vcombine.low %v1454, %v1546
        %v1568 = vcombine.high %v1454, %v1546
        %v1570 = vunpack.c.l.s4 1983009808
        %v1571 = vunpack.c.0.s8 %v1570
        %v1572 = vlaneseq
        %v1573 = vshrl.u32 %v1572, 7
        %v1574 = vsub.s32 %v1571, %v1573
        %v1575 = vrot.slane %v1567, %v1574
        %v1577 = vunpack.c.l.s4 1983009808
        %v1578 = vunpack.c.0.s8 %v1577
        %v1579 = vlaneseq
        %v1580 = vshrl.u32 %v1579, 7
        %v1581 = vsub.s32 %v1578, %v1580
        %v1582 = vrot.slane %v1568, %v1581
        %v1583 = vcombine.low %v1559, %v1575
        %v1584 = vcombine.high %v1559, %v1575
        %v1586 = vunpack.c.l.s4 1934713408
        %v1587 = vunpack.c.0.s8 %v1586
        %v1588 = vlaneseq
        %v1589 = vshrl.u32 %v1588, 7
        %v1590 = vsub.s32 %v1587, %v1589
        %v1591 = vrot.slane %v1583, %v1590
        %v1593 = vunpack.c.l.s4 1934713408
        %v1594 = vunpack.c.0.s8 %v1593
        %v1595 = vlaneseq
        %v1596 = vshrl.u32 %v1595, 7
        %v1597 = vsub.s32 %v1594, %v1596
        %v1598 = vrot.slane %v1584, %v1597
        %v1599 = vcombine.low %v1566, %v1582
        %v1600 = vcombine.high %v1566, %v1582
        %v1602 = vunpack.c.l.s4 1934713408
        %v1603 = vunpack.c.0.s8 %v1602
        %v1604 = vlaneseq
        %v1605 = vshrl.u32 %v1604, 7
        %v1606 = vsub.s32 %v1603, %v1605
        %v1607 = vrot.slane %v1599, %v1606
        %v1609 = vunpack.c.l.s4 1934713408
        %v1610 = vunpack.c.0.s8 %v1609
        %v1611 = vlaneseq
        %v1612 = vshrl.u32 %v1611, 7
        %v1613 = vsub.s32 %v1610, %v1612
        %v1614 = vrot.slane %v1600, %v1613
        %v1615 = vcombine.high %v1591, 0.0
        %v1616 = vcombine.high %v1598, 0.0
        %v1617 = vcombine.high %v1607, 0.0
        %v1618 = vcombine.high %v1614, 0.0
        %v1619 = vcombine.low %v1591, %v1598
        %v1621 = vunpack.c.l.s4 1983009808
        %v1622 = vunpack.c.0.s8 %v1621
        %v1623 = vlaneseq
        %v1624 = vshrl.u32 %v1623, 7
        %v1625 = vsub.s32 %v1622, %v1624
        %v1626 = vrot.slane %v1619, %v1625
        %v1627 = vcombine.low %v1615, %v1616
        %v1629 = vunpack.c.l.s4 1983009808
        %v1630 = vunpack.c.0.s8 %v1629
        %v1631 = vlaneseq
        %v1632 = vshrl.u32 %v1631, 7
        %v1633 = vsub.s32 %v1630, %v1632
        %v1634 = vrot.slane %v1627, %v1633
        %v1635 = vcombine.low %v1607, %v1614
        %v1637 = vunpack.c.l.s4 1983009808
        %v1638 = vunpack.c.0.s8 %v1637
        %v1639 = vlaneseq
        %v1640 = vshrl.u32 %v1639, 7
        %v1641 = vsub.s32 %v1638, %v1640
        %v1642 = vrot.slane %v1635, %v1641
        %v1643 = vcombine.low %v1617, %v1618
        %v1645 = vunpack.c.l.s4 1983009808
        %v1646 = vunpack.c.0.s8 %v1645
        %v1647 = vlaneseq
        %v1648 = vshrl.u32 %v1647, 7
        %v1649 = vsub.s32 %v1646, %v1648
        %v1650 = vrot.slane %v1643, %v1649
        %v1651 = vcombine.low %v1626, %v1634
        %v1652 = vcombine.high %v1626, %v1634
        %v1654 = vunpack.c.l.s4 1934713408
        %v1655 = vunpack.c.0.s8 %v1654
        %v1656 = vlaneseq
        %v1657 = vshrl.u32 %v1656, 7
        %v1658 = vsub.s32 %v1655, %v1657
        %v1659 = vrot.slane %v1651, %v1658
        %v1661 = vunpack.c.l.s4 1934713408
        %v1662 = vunpack.c.0.s8 %v1661
        %v1663 = vlaneseq
        %v1664 = vshrl.u32 %v1663, 7
        %v1665 = vsub.s32 %v1662, %v1664
        %v1666 = vrot.slane %v1652, %v1665
        %v1667 = vcombine.low %v1642, %v1650
        %v1668 = vcombine.high %v1642, %v1650
        %v1670 = vunpack.c.l.s4 1934713408
        %v1671 = vunpack.c.0.s8 %v1670
        %v1672 = vlaneseq
        %v1673 = vshrl.u32 %v1672, 7
        %v1674 = vsub.s32 %v1671, %v1673
        %v1675 = vrot.slane %v1667, %v1674
        %v1677 = vunpack.c.l.s4 1934713408
        %v1678 = vunpack.c.0.s8 %v1677
        %v1679 = vlaneseq
        %v1680 = vshrl.u32 %v1679, 7
        %v1681 = vsub.s32 %v1678, %v1680
        %v1682 = vrot.slane %v1668, %v1681
        %v1683 = vcombine.low %v1659, %v1675
        %v1684 = vcombine.high %v1659, %v1675
        %v1685 = vcombine.low %v1666, %v1682
        %v1686 = vcombine.high %v1666, %v1682
        %1688 = vrot.lane.b32.xlu0 %v1684, 8
        %v1689 = vpop.permute.xlu0 %1688
        %1692 = vrot.lane.b32.xlu0 %v1685, 16
        %v1693 = vpop.permute.xlu0 %1692
        %1696 = vrot.lane.b32.xlu0 %v1686, 24
        %v1697 = vpop.permute.xlu0 %1696
        %v1699 = vsel %vm1129, %v1683, %v1689
        %vm1700 = vcmask 130048
        %v1701 = vsel %vm1700, %v1699, %v1693
        %vm1702 = vcmask 195584
        %v1703 = vsel %vm1702, %v1701, %v1697
        %v1704 = vpack.c.bf16 %v1703, %v1703
        %v1705 = vld [vmem:[#allocation12] sm:$0xf]
        %v1706 = vld [vmem:[#allocation12 + $0x4] sm:$0xf]
        %v1707 = vld [vmem:[#allocation12 + $0x8] sm:$0xf]
        %v1708 = vld [vmem:[#allocation12 + $0xc] sm:$0xf]
        %v1709 = vld [vmem:[%s8] sm:$0x1]
        %v1711 = vlaneseq
        %v1712 = vshrl.u32 %v1711, 7
        %v1713 = vsub.s32 0, %v1712
        %v1714 = vrot.slane %v1709, %v1713
        %v1720 = vunpack.c.l.b16 %v1705
        %v1721 = vunpack.c.l.b16 %v1706
        %v1722 = vunpack.c.l.b16 %v1707
        %v1723 = vunpack.c.l.b16 %v1708
        %v1724 = vpack.c.b16 %v1721, %v1720
        %v1725 = vpack.c.b16 %v1723, %v1722
        %v1729 = vsel %vm921, %v1704, 0
        %1731 = vmatprep.subr.bf16.mxu0 0
        %1732 = vmatpush1.bf16.msra.mxu0 %v1724
        %1733 = vmatprep.subr.bf16.mxu0 0
        %1734 = vmatpush1.bf16.msra.mxu0 %v1725
        %1735 = vmatprep.subr.bf16.mxu0 0
        %1736 = vmatpush1.bf16.msra.mxu0 0
        %1737 = vmatprep.subr.bf16.mxu0 0
        %1738 = vmatpush1.bf16.msra.mxu0 0
        %1739 = vmatprep.subr.bf16.mxu0 0
        %1740 = vmatpush1.bf16.msra.mxu0 0
        %1741 = vmatprep.subr.bf16.mxu0 0
        %1742 = vmatpush1.bf16.msra.mxu0 0
        %1743 = vmatprep.subr.bf16.mxu0 0
        %1744 = vmatpush1.bf16.msra.mxu0 0
        %1745 = vmatprep.subr.bf16.mxu0 0
        %1746 = vmatpush1.bf16.msra.mxu0 0
        %1747 = vmatprep.subr.bf16.mxu0 0
        %1748 = vmatpush1.bf16.msra.mxu0 0
        %1749 = vmatprep.subr.bf16.mxu0 0
        %1750 = vmatpush1.bf16.msra.mxu0 0
        %1751 = vmatprep.subr.bf16.mxu0 0
        %1752 = vmatpush1.bf16.msra.mxu0 0
        %1753 = vmatprep.subr.bf16.mxu0 0
        %1754 = vmatpush1.bf16.msra.mxu0 0
        %1755 = vmatprep.subr.bf16.mxu0 0
        %1756 = vmatpush1.bf16.msra.mxu0 0
        %1757 = vmatprep.subr.bf16.mxu0 0
        %1758 = vmatpush1.bf16.msra.mxu0 0
        %1759 = vmatprep.subr.bf16.mxu0 0
        %1760 = vmatpush1.bf16.msra.mxu0 0
        %1761 = vmatprep.subr.bf16.mxu0 0
        %1762 = vmatpush1.bf16.msra.mxu0 0
        %1763 = vmatprep.mubr.bf16.mxu0 0
        %1764 = vmatmul.mubr.bf16.gmra.mrb[0].mxu0 %v1729
        %v1765 = vpop.f32.mrb[0].mxu0
        %v1766 = vadd.f32 %v1714, %v1765
        %v1767 = vpop.f32.mrb[0].mxu0
        %v1768 = vpop.f32.mrb[0].mxu0
        %v1769 = vpop.f32.mrb[0].mxu0
        %1770 = vdwg.mxu0
        %v1771 = vadd.f32 %v1766, %v512
        %v1772 = vsel %vm921, %v1771, 0.0
        %1773 = vadd.xlane.f32.xlu0 %v1772
        %v1774 = vpop.xlane.xlu0 %1773
        %v1775 = vrcp.pop 32.0
        %v1776 = vmul.f32 %v1774, %v1775
        %v1777 = vmul.f32 %v1771, %v1771
        %v1778 = vsel %vm921, %v1777, 0.0
        %1779 = vadd.xlane.f32.xlu0 %v1778
        %v1780 = vpop.xlane.xlu0 %1779
        %v1781 = vmul.f32 %v1780, %v1775
        %v1782 = vmul.f32 %v1776, %v1776
        %v1783 = vsub.f32 %v1781, %v1782
        %v1784 = vmax.f32 %v1783, 0.0
        %v1785 = vsub.f32 %v1771, %v1776
        %v1786 = vadd.f32 %v1784, 1e-12
        %v1787 = vrsqrt.pop %v1786
        %v1788 = vmul.f32 %v1785, %v1787
        %v1789 = vld [vmem:[%s9] sm:$0x1]
        %v1791 = vlaneseq
        %v1792 = vshrl.u32 %v1791, 7
        %v1793 = vsub.s32 0, %v1792
        %v1794 = vrot.slane %v1789, %v1793
        %v1796 = vmul.f32 %v1788, %v1794
        %v1797 = vld [vmem:[%s10] sm:$0x1]
        %v1799 = vlaneseq
        %v1800 = vshrl.u32 %v1799, 7
        %v1801 = vsub.s32 0, %v1800
        %v1802 = vrot.slane %v1797, %v1801
        %v1804 = vadd.f32 %v1796, %v1802
        %1805 = vst.msk [vmem:[%s507] sm:$0xff] %vm921, %v1804
        %s1806 = sand.u32 %s302, 1
        %s1807 = scalar_lea.sflag [#allocation6], %s1806
        %s1808 = sand.u32 %s302, 1
        %s1809 = smul.addr %s1808, 8
        %s1810 = scalar_lea.vmem [#allocation13], %s1809
        // Predicated region
        $region89: #{tpu_custom_call.1} parent=63 // pred_check
          %p1811 = pneg %p312
        $region90: #{tpu_custom_call.1} parent=63 // pred_check_branch
          %1813 = sbr.rel (%p1811) target = $region92
        $region91: #{tpu_custom_call.1} parent=63 // pred_region
          %s1815 = ssub.s32 128, 128
          %1816 = vsyncadd %s1807, %s1815
          %s1817 = sadd.s32 %s37, %s36
          %s1818 = smul.addr %s1817, 128
          %s1819 = scalar_lea.hbm %s11, %s1818
          %s1821 = sshll.u32 %s1810, 4
          %s1822 = int_to_ptr.vmem [resolvable:$true] %s1821
          %1824 = dma.vmem_to_hbm [thread:$0]  %s1822, 128, %s1819, %s1807
        $region92: #{tpu_custom_call.1} parent=63 // pred_fallthru
          _
      $region64: #{tpu_custom_call.1} parent=5 // pred_fallthru
        _
      %p1825 = scmp.le.s32.totalorder 2, %s27
      // Predicated region
      $region93: #{tpu_custom_call.1} parent=5 // pred_check
        %p1826 = pneg %p1825
      $region94: #{tpu_custom_call.1} parent=5 // pred_check_branch
        %1828 = sbr.rel (%p1826) target = $region96
      $region95: #{tpu_custom_call.1} parent=5 // pred_region
        %s1829 = ssub.s32 %s27, 2
        // Predicated region
        $region97: #{tpu_custom_call.1} parent=95 // pred_check
          %p1830 = pneg %p318
        $region98: #{tpu_custom_call.1} parent=95 // pred_check_branch
          %1832 = sbr.rel (%p1830) target = $region100
        $region99: #{tpu_custom_call.1} parent=95 // pred_region
          %s1833 = sand.u32 %s303, 1
          %s1834 = scalar_lea.sflag [#allocation6], %s1833
          %s1835 = sand.u32 %s303, 1
          %s1836 = smul.addr %s1835, 8
          %s1837 = scalar_lea.vmem [#allocation13], %s1836
          %1838 = dma.done %s1834, 128
        $region100: #{tpu_custom_call.1} parent=95 // pred_fallthru
          _
      $region96: #{tpu_custom_call.1} parent=5 // pred_fallthru
        _
    $region6: #{tpu_custom_call.1} parent=1 // loop_footer
      %s31 = sadd.s32 1, %s27
    $region7: #{tpu_custom_call.1} parent=1 // loop_footer_branch
      %26 = sbr.rel target = $region3
    $region8: #{tpu_custom_call.1} parent=1 // loop_exit
      _
    %1839 = vsyncpa [#allocation5], 1
    %s1840 = scalar_lea.sflag [#allocation5], 1
    %1841 = vsyncpa %s1840, 1
    %1842 = vsyncpa [#allocation8], 1
    %s1843 = scalar_lea.sflag [#allocation8], 1
    %1844 = vsyncpa %s1843, 1
    %1845 = vsyncpa [#allocation11], 1
    %1846 = vsyncpa [#allocation6], 1
    %s1847 = scalar_lea.sflag [#allocation6], 1
    %1848 = vsyncpa %s1847, 1

</llo_original>
